<compile_context>
chip_gen: v7x
topology: tpu7x:2x2x1
jax: 0.10.0
libtpu: 0.0.40
codegen_flags: <defaults>
</compile_context>

<pallas_src>
import functools

import jax
import jax.numpy as jnp
import numpy as np
from jax import lax
from jax.experimental import pallas as pl
from jax.experimental.pallas import tpu as pltpu


# ---------------------------------------------------------------------------
# Fused kernel: Conv3x3 (pad=1, bias-free) + BatchNorm2d (training statistics)
# ---------------------------------------------------------------------------
def _conv_bn_kernel(x_ref, wt_ref, mask_ref, gamma_ref, beta_ref, o_ref,
                    patches_ref, sum_ref, sumsq_ref, *,
                    batch, batch_tile, cin, height, width, eps):
    """Grid: (B // Bt,), sequential ("arbitrary").

    x_ref:       (Bt, Cin, L)    L = H*W + 2*W + 2, zero-halo'd flat images (bf16)
    wt_ref:      (Cout, 9*Cin)   weights in im2col layout, rows (dy, dx, cin) (bf16)
    mask_ref:    (2, H*W)        row 0: left-column mask, row 1: right-column mask (bf16)
    gamma_ref:   (Cout, 1)       BN weight (f32)
    beta_ref:    (Cout, 1)       BN bias   (f32)
    o_ref:       (B, Cout, H*W)  resident output block (f32)
    patches_ref: (9*Cin, Bt*H*W) VMEM scratch, im2col patches (bf16)
    sum_ref:     (Cout, 1)       VMEM scratch, per-channel sum   (f32)
    sumsq_ref:   (Cout, 1)       VMEM scratch, per-channel sumsq (f32)
    """
    t = pl.program_id(0)
    n_tiles = pl.num_programs(0)
    hw = height * width

    @pl.when(t == 0)
    def _():
        sum_ref[...] = jnp.zeros_like(sum_ref)
        sumsq_ref[...] = jnp.zeros_like(sumsq_ref)

    left_mask = mask_ref[0:1, :]    # (1, HW) bf16, zero where out-col j == 0
    right_mask = mask_ref[1:2, :]   # (1, HW) bf16, zero where out-col j == W-1

    # ---- im2col: 9 lane-offset slices per image of the halo-padded buffer ----
    # Row halo is the explicit zero padding; the column halo (wrap-around reads
    # at j-1 / j+1 across the image edge) is the precomputed multiplicative
    # lane mask.  Bt and the tap loop are small static trip counts (unrolled).
    for m in range(batch_tile):
        for dy in range(3):
            for dx in range(3):
                k = dy * 3 + dx
                start = dy * width + dx
                slab = x_ref[m, :, start:start + hw]          # (Cin, HW) bf16
                if dx == 0:
                    slab = slab * left_mask
                elif dx == 2:
                    slab = slab * right_mask
                patches_ref[k * cin:(k + 1) * cin, m * hw:(m + 1) * hw] = slab

    # ---- single im2col matmul on the MXU: bf16 x bf16 -> f32 accumulate -----
    y = jnp.dot(wt_ref[...], patches_ref[...],
                preferred_element_type=jnp.float32)           # (Cout, Bt*HW)

    # ---- single-pass BN statistics (f32) -------------------------------------
    sum_ref[...] += jnp.sum(y, axis=1, keepdims=True)
    sumsq_ref[...] += jnp.sum(y * y, axis=1, keepdims=True)

    # ---- park the conv result in the resident output block (stays in VMEM) --
    base = t * batch_tile
    for m in range(batch_tile):
        o_ref[base + m] = y[:, m * hw:(m + 1) * hw]           # lane-aligned slice

    # ---- epilogue (last tile): batch stats + affine, one whole-block pass ----
    @pl.when(t == n_tiles - 1)
    def _():
        inv_n = 1.0 / float(batch * hw)
        mean = sum_ref[...] * inv_n                           # (Cout, 1)
        var = jnp.maximum(sumsq_ref[...] * inv_n - mean * mean, 0.0)  # biased
        scale = gamma_ref[...] * lax.rsqrt(var + eps)         # EUP rsqrt
        shift = beta_ref[...] - mean * scale
        o_ref[...] = o_ref[...] * scale[None] + shift[None]   # (B, Cout, HW)


# ---------------------------------------------------------------------------
# Wrapper
# ---------------------------------------------------------------------------
def _ceil_to(x, m):
    return -(-x // m) * m


def conv_block_forward(x, w, gamma, beta, *, eps=1e-5, batch_tile=None):
    """ConvBlock.forward.

    x: (B, Cin, H, W) NCHW, w: (3, 3, Cin, Cout) HWIO, gamma/beta: (Cout,).
    Returns (B, Cout, H, W).  The conv bias is omitted on purpose: under
    training-mode BatchNorm a per-channel constant cancels exactly in
    (y - mean), so the forward output is unchanged.
    """
    B, Cin, H, W = x.shape
    KH, KW, WCin, Cout = w.shape
    assert (KH, KW) == (3, 3) and WCin == Cin, \
        "this kernel implements the 3x3 / padding=1 ConvBlock"
    HW = H * W
    L = HW + 2 * W + 2  # flattened image + (W+1)-element zero halo on each end

    # Batch tile: the whole batch per step when it comfortably fits VMEM.
    if batch_tile is None:
        batch_tile = min(B, 8)
        while B % batch_tile:
            batch_tile -= 1

        def _step_bytes(bt):
            return (9 * Cin) * bt * HW * 2 + 2 * bt * Cin * L * 2

        while batch_tile > 1 and _step_bytes(batch_tile) > (12 << 20):
            batch_tile -= 1
            while B % batch_tile:
                batch_tile -= 1
    assert B % batch_tile == 0
    n_tiles = B // batch_tile

    # Halo + layout prep (tiny, done once in XLA): flatten spatial, add the row
    # halo as a single pad, cast multiplicands to bf16 (f32 accumulate on MXU).
    x_flat = jnp.pad(x.astype(jnp.bfloat16).reshape(B, Cin, HW),
                     ((0, 0), (0, 0), (W + 1, W + 1)))
    # Weights in im2col layout (Cout, 9*Cin), row order (dy, dx, cin).
    wt = jnp.transpose(w, (3, 0, 1, 2)).reshape(Cout, 9 * Cin).astype(jnp.bfloat16)
    gamma_c = gamma.reshape(Cout, 1).astype(jnp.float32)
    beta_c = beta.reshape(Cout, 1).astype(jnp.float32)
    # Precomputed multiplicative column-edge masks (resident, reused per step).
    col = jnp.arange(HW, dtype=jnp.int32) % W
    edge_mask = jnp.stack([(col != 0).astype(jnp.bfloat16),        # left  (dx==0)
                           (col != W - 1).astype(jnp.bfloat16)])   # right (dx==2)

    # VMEM budget from the actual (layout-padded) block sizes, with headroom.
    needed = (
        B * _ceil_to(Cout, 8) * _ceil_to(HW, 128) * 4                 # resident out
        + 2 * batch_tile * _ceil_to(Cin, 16) * _ceil_to(L, 128) * 2   # x, dbl-buffered
        + 2 * _ceil_to(Cout, 16) * _ceil_to(9 * Cin, 128) * 2         # weights
        + 2 * _ceil_to(2, 16) * _ceil_to(HW, 128) * 2                 # edge masks
        + 2 * 2 * _ceil_to(Cout, 8) * 128 * 4                         # gamma/beta
        + _ceil_to(9 * Cin, 16) * _ceil_to(batch_tile * HW, 128) * 2  # patches
        + 2 * _ceil_to(Cout, 8) * 128 * 4                             # sum/sumsq
    )
    vmem_limit = int(min(max(2 * needed + (2 << 20), 16 << 20), 128 << 20))

    kernel = functools.partial(
        _conv_bn_kernel, batch=B, batch_tile=batch_tile, cin=Cin,
        height=H, width=W, eps=eps)

    out = pl.pallas_call(
        kernel,
        out_shape=jax.ShapeDtypeStruct((B, Cout, HW), jnp.float32),
        grid=(n_tiles,),
        in_specs=[
            pl.BlockSpec((batch_tile, Cin, L), lambda t: (t, 0, 0)),  # batch tile
            pl.BlockSpec((Cout, 9 * Cin), lambda t: (0, 0)),          # weights
            pl.BlockSpec((2, HW), lambda t: (0, 0)),                  # edge masks
            pl.BlockSpec((Cout, 1), lambda t: (0, 0)),                # gamma
            pl.BlockSpec((Cout, 1), lambda t: (0, 0)),                # beta
        ],
        # Whole output as one revisited block: stays resident in VMEM across
        # the batch loop, written back to HBM exactly once after the BN apply.
        out_specs=pl.BlockSpec((B, Cout, HW), lambda t: (0, 0, 0)),
        scratch_shapes=[
            pltpu.VMEM((9 * Cin, batch_tile * HW), jnp.bfloat16),  # im2col patches
            pltpu.VMEM((Cout, 1), jnp.float32),                    # per-channel sum
            pltpu.VMEM((Cout, 1), jnp.float32),                    # per-channel sumsq
        ],
        compiler_params=pltpu.CompilerParams(
            # Sequential: cross-batch stats accumulation + revisited output.
            dimension_semantics=("arbitrary",),
            vmem_limit_bytes=vmem_limit),
    )(x_flat, wt, edge_mask, gamma_c, beta_c)

    # Output is already channel-major NCHW; this reshape is free.
    return out.reshape(B, Cout, H, W)


# ---------------------------------------------------------------------------
# Pure-XLA reference (self-contained correctness check)
# ---------------------------------------------------------------------------
def reference_forward(x, w, bias, gamma, beta, eps=1e-5):
    # The conv consumes the same bf16-rounded operands as the kernel (bf16
    # multiplicands, f32 accumulate on the MXU), so the comparison isolates
    # the kernel structure (taps, halo masks, BN math).
    xr = x.astype(jnp.bfloat16).astype(jnp.float32)
    wr = w.astype(jnp.bfloat16).astype(jnp.float32)
    y = lax.conv_general_dilated(
        xr, wr, window_strides=(1, 1), padding="SAME",
        dimension_numbers=("NCHW", "HWIO", "NCHW"),
        precision=lax.Precision.HIGHEST)
    y = y + bias.reshape(1, -1, 1, 1)   # kernel drops the bias; it cancels in BN
    mean = jnp.mean(y, axis=(0, 2, 3), keepdims=True)
    var = jnp.mean((y - mean) ** 2, axis=(0, 2, 3), keepdims=True)  # biased
    return ((y - mean) * (gamma.reshape(1, -1, 1, 1) * lax.rsqrt(var + eps))
            + beta.reshape(1, -1, 1, 1))


# ---------------------------------------------------------------------------
if __name__ == "__main__":
    key = jax.random.PRNGKey(0)
    kx, kw, kb, kg, kbt = jax.random.split(key, 5)

    # ConvBlock(in_channel=8, out_channel=16, kernel_size=3, padding=1)
    B, Cin, Cout, H, W = 4, 8, 16, 16, 16
    x = jax.random.normal(kx, (B, Cin, H, W), jnp.float32)

    bound = 1.0 / np.sqrt(Cin * 9)  # PyTorch Conv2d default init range
    w = jax.random.uniform(kw, (3, 3, Cin, Cout), jnp.float32, -bound, bound)  # HWIO
    bias = jax.random.uniform(kb, (Cout,), jnp.float32, -bound, bound)
    # Fresh BatchNorm2d has weight=1 / bias=0; use non-trivial learnable values
    # here so the affine path is actually exercised.
    gamma = jax.random.uniform(kg, (Cout,), jnp.float32, 0.5, 1.5)
    beta = 0.1 * jax.random.normal(kbt, (Cout,), jnp.float32)

    fwd = jax.jit(conv_block_forward)
    out = jax.block_until_ready(fwd(x, w, gamma, beta))
    assert out.shape == (B, Cout, H, W)

    ref = reference_forward(x, w, bias, gamma, beta)
    np.testing.assert_allclose(np.asarray(out), np.asarray(ref),
                               rtol=1e-3, atol=1e-3)
    print("KERNEL_OK")
</pallas_src>

<mosaic_0001>
module attributes {stable_mosaic.version = 11 : i64} {
  func.func @_conv_bn_kernel(%arg0: i32, %arg1: memref<4x8x290xbf16, #tpu.memory_space<vmem>>, %arg2: memref<16x72xbf16, #tpu.memory_space<vmem>>, %arg3: memref<2x256xbf16, #tpu.memory_space<vmem>>, %arg4: memref<16x1xf32, #tpu.memory_space<vmem>>, %arg5: memref<16x1xf32, #tpu.memory_space<vmem>>, %arg6: memref<4x16x256xf32, #tpu.memory_space<vmem>>, %arg7: memref<72x1024xbf16, #tpu.memory_space<vmem>>, %arg8: memref<16x1xf32, #tpu.memory_space<vmem>>, %arg9: memref<16x1xf32, #tpu.memory_space<vmem>>) attributes {dimension_semantics = [#tpu.dimension_semantics<arbitrary>], iteration_bounds = array<i64: 1>, scalar_prefetch = 0 : i64, scratch_operands = 3 : i64, tpu.core_type = #tpu.core_type<tc>, window_params = [{transform_indices = @transform_0, window_bounds = array<i64: 4, 8, 290>}, {pipeline_mode = #tpu.pipeline_mode<synchronous>, transform_indices = @transform_1, window_bounds = array<i64: 16, 72>}, {pipeline_mode = #tpu.pipeline_mode<synchronous>, transform_indices = @transform_2, window_bounds = array<i64: 2, 256>}, {pipeline_mode = #tpu.pipeline_mode<synchronous>, transform_indices = @transform_3, window_bounds = array<i64: 16, 1>}, {pipeline_mode = #tpu.pipeline_mode<synchronous>, transform_indices = @transform_4, window_bounds = array<i64: 16, 1>}, {pipeline_mode = #tpu.pipeline_mode<synchronous>, transform_indices = @transform_5, window_bounds = array<i64: 4, 16, 256>}]} {
    %c0_i32 = arith.constant 0 : i32
    %0 = arith.cmpi eq, %arg0, %c0_i32 : i32
    %1 = arith.extui %0 : i1 to i32
    %c0_i32_0 = arith.constant 0 : i32
    %2 = arith.cmpi ne, %1, %c0_i32_0 : i32
    scf.if %2 {
      %cst_191 = arith.constant 0.000000e+00 : f32
      %203 = vector.broadcast %cst_191 : f32 to vector<16x1xf32>
      %c0_192 = arith.constant 0 : index
      %c0_193 = arith.constant 0 : index
      %204 = vector.load %arg8[%c0_192, %c0_193] : memref<16x1xf32, #tpu.memory_space<vmem>>, vector<16x1xf32>
      tpu.vector_store %arg8[%c0_192, %c0_193], %203 {strides = array<i32>} : memref<16x1xf32, #tpu.memory_space<vmem>>, vector<16x1xf32>,
      %cst_194 = arith.constant 0.000000e+00 : f32
      %205 = vector.broadcast %cst_194 : f32 to vector<16x1xf32>
      %c0_195 = arith.constant 0 : index
      %c0_196 = arith.constant 0 : index
      %206 = vector.load %arg9[%c0_195, %c0_196] : memref<16x1xf32, #tpu.memory_space<vmem>>, vector<16x1xf32>
      tpu.vector_store %arg9[%c0_195, %c0_196], %205 {strides = array<i32>} : memref<16x1xf32, #tpu.memory_space<vmem>>, vector<16x1xf32>,
    } else {
    }
    %c0 = arith.constant 0 : index
    %c0_1 = arith.constant 0 : index
    %3 = vector.load %arg3[%c0, %c0_1] : memref<2x256xbf16, #tpu.memory_space<vmem>>, vector<1x256xbf16>
    %c1 = arith.constant 1 : index
    %c0_2 = arith.constant 0 : index
    %4 = vector.load %arg3[%c1, %c0_2] : memref<2x256xbf16, #tpu.memory_space<vmem>>, vector<1x256xbf16>
    %c0_3 = arith.constant 0 : index
    %c0_4 = arith.constant 0 : index
    %c0_5 = arith.constant 0 : index
    %5 = vector.load %arg1[%c0_3, %c0_4, %c0_5] : memref<4x8x290xbf16, #tpu.memory_space<vmem>>, vector<1x8x256xbf16>
    %6 = vector.shape_cast %5 : vector<1x8x256xbf16> to vector<8x256xbf16>
    %7 = vector.broadcast %3 : vector<1x256xbf16> to vector<8x256xbf16>
    %8 = arith.mulf %6, %7 : vector<8x256xbf16>
    %c0_6 = arith.constant 0 : index
    %c0_7 = arith.constant 0 : index
    %9 = vector.load %arg7[%c0_6, %c0_7] : memref<72x1024xbf16, #tpu.memory_space<vmem>>, vector<8x256xbf16>
    tpu.vector_store %arg7[%c0_6, %c0_7], %8 {strides = array<i32>} : memref<72x1024xbf16, #tpu.memory_space<vmem>>, vector<8x256xbf16>,
    %c0_8 = arith.constant 0 : index
    %c0_9 = arith.constant 0 : index
    %c1_10 = arith.constant 1 : index
    %10 = vector.load %arg1[%c0_8, %c0_9, %c1_10] : memref<4x8x290xbf16, #tpu.memory_space<vmem>>, vector<1x8x256xbf16>
    %11 = vector.shape_cast %10 : vector<1x8x256xbf16> to vector<8x256xbf16>
    %c8 = arith.constant 8 : index
    %c0_11 = arith.constant 0 : index
    %12 = vector.load %arg7[%c8, %c0_11] : memref<72x1024xbf16, #tpu.memory_space<vmem>>, vector<8x256xbf16>
    tpu.vector_store %arg7[%c8, %c0_11], %11 {strides = array<i32>} : memref<72x1024xbf16, #tpu.memory_space<vmem>>, vector<8x256xbf16>,
    %c0_12 = arith.constant 0 : index
    %c0_13 = arith.constant 0 : index
    %c2 = arith.constant 2 : index
    %13 = vector.load %arg1[%c0_12, %c0_13, %c2] : memref<4x8x290xbf16, #tpu.memory_space<vmem>>, vector<1x8x256xbf16>
    %14 = vector.shape_cast %13 : vector<1x8x256xbf16> to vector<8x256xbf16>
    %15 = vector.broadcast %4 : vector<1x256xbf16> to vector<8x256xbf16>
    %16 = arith.mulf %14, %15 : vector<8x256xbf16>
    %c16 = arith.constant 16 : index
    %c0_14 = arith.constant 0 : index
    %17 = vector.load %arg7[%c16, %c0_14] : memref<72x1024xbf16, #tpu.memory_space<vmem>>, vector<8x256xbf16>
    tpu.vector_store %arg7[%c16, %c0_14], %16 {strides = array<i32>} : memref<72x1024xbf16, #tpu.memory_space<vmem>>, vector<8x256xbf16>,
    %c0_15 = arith.constant 0 : index
    %c0_16 = arith.constant 0 : index
    %c16_17 = arith.constant 16 : index
    %18 = vector.load %arg1[%c0_15, %c0_16, %c16_17] : memref<4x8x290xbf16, #tpu.memory_space<vmem>>, vector<1x8x256xbf16>
    %19 = vector.shape_cast %18 : vector<1x8x256xbf16> to vector<8x256xbf16>
    %20 = vector.broadcast %3 : vector<1x256xbf16> to vector<8x256xbf16>
    %21 = arith.mulf %19, %20 : vector<8x256xbf16>
    %c24 = arith.constant 24 : index
    %c0_18 = arith.constant 0 : index
    %22 = vector.load %arg7[%c24, %c0_18] : memref<72x1024xbf16, #tpu.memory_space<vmem>>, vector<8x256xbf16>
    tpu.vector_store %arg7[%c24, %c0_18], %21 {strides = array<i32>} : memref<72x1024xbf16, #tpu.memory_space<vmem>>, vector<8x256xbf16>,
    %c0_19 = arith.constant 0 : index
    %c0_20 = arith.constant 0 : index
    %c17 = arith.constant 17 : index
    %23 = vector.load %arg1[%c0_19, %c0_20, %c17] : memref<4x8x290xbf16, #tpu.memory_space<vmem>>, vector<1x8x256xbf16>
    %24 = vector.shape_cast %23 : vector<1x8x256xbf16> to vector<8x256xbf16>
    %c32 = arith.constant 32 : index
    %c0_21 = arith.constant 0 : index
    %25 = vector.load %arg7[%c32, %c0_21] : memref<72x1024xbf16, #tpu.memory_space<vmem>>, vector<8x256xbf16>
    tpu.vector_store %arg7[%c32, %c0_21], %24 {strides = array<i32>} : memref<72x1024xbf16, #tpu.memory_space<vmem>>, vector<8x256xbf16>,
    %c0_22 = arith.constant 0 : index
    %c0_23 = arith.constant 0 : index
    %c18 = arith.constant 18 : index
    %26 = vector.load %arg1[%c0_22, %c0_23, %c18] : memref<4x8x290xbf16, #tpu.memory_space<vmem>>, vector<1x8x256xbf16>
    %27 = vector.shape_cast %26 : vector<1x8x256xbf16> to vector<8x256xbf16>
    %28 = vector.broadcast %4 : vector<1x256xbf16> to vector<8x256xbf16>
    %29 = arith.mulf %27, %28 : vector<8x256xbf16>
    %c40 = arith.constant 40 : index
    %c0_24 = arith.constant 0 : index
    %30 = vector.load %arg7[%c40, %c0_24] : memref<72x1024xbf16, #tpu.memory_space<vmem>>, vector<8x256xbf16>
    tpu.vector_store %arg7[%c40, %c0_24], %29 {strides = array<i32>} : memref<72x1024xbf16, #tpu.memory_space<vmem>>, vector<8x256xbf16>,
    %c0_25 = arith.constant 0 : index
    %c0_26 = arith.constant 0 : index
    %c32_27 = arith.constant 32 : index
    %31 = vector.load %arg1[%c0_25, %c0_26, %c32_27] : memref<4x8x290xbf16, #tpu.memory_space<vmem>>, vector<1x8x256xbf16>
    %32 = vector.shape_cast %31 : vector<1x8x256xbf16> to vector<8x256xbf16>
    %33 = vector.broadcast %3 : vector<1x256xbf16> to vector<8x256xbf16>
    %34 = arith.mulf %32, %33 : vector<8x256xbf16>
    %c48 = arith.constant 48 : index
    %c0_28 = arith.constant 0 : index
    %35 = vector.load %arg7[%c48, %c0_28] : memref<72x1024xbf16, #tpu.memory_space<vmem>>, vector<8x256xbf16>
    tpu.vector_store %arg7[%c48, %c0_28], %34 {strides = array<i32>} : memref<72x1024xbf16, #tpu.memory_space<vmem>>, vector<8x256xbf16>,
    %c0_29 = arith.constant 0 : index
    %c0_30 = arith.constant 0 : index
    %c33 = arith.constant 33 : index
    %36 = vector.load %arg1[%c0_29, %c0_30, %c33] : memref<4x8x290xbf16, #tpu.memory_space<vmem>>, vector<1x8x256xbf16>
    %37 = vector.shape_cast %36 : vector<1x8x256xbf16> to vector<8x256xbf16>
    %c56 = arith.constant 56 : index
    %c0_31 = arith.constant 0 : index
    %38 = vector.load %arg7[%c56, %c0_31] : memref<72x1024xbf16, #tpu.memory_space<vmem>>, vector<8x256xbf16>
    tpu.vector_store %arg7[%c56, %c0_31], %37 {strides = array<i32>} : memref<72x1024xbf16, #tpu.memory_space<vmem>>, vector<8x256xbf16>,
    %c0_32 = arith.constant 0 : index
    %c0_33 = arith.constant 0 : index
    %c34 = arith.constant 34 : index
    %39 = vector.load %arg1[%c0_32, %c0_33, %c34] : memref<4x8x290xbf16, #tpu.memory_space<vmem>>, vector<1x8x256xbf16>
    %40 = vector.shape_cast %39 : vector<1x8x256xbf16> to vector<8x256xbf16>
    %41 = vector.broadcast %4 : vector<1x256xbf16> to vector<8x256xbf16>
    %42 = arith.mulf %40, %41 : vector<8x256xbf16>
    %c64 = arith.constant 64 : index
    %c0_34 = arith.constant 0 : index
    %43 = vector.load %arg7[%c64, %c0_34] : memref<72x1024xbf16, #tpu.memory_space<vmem>>, vector<8x256xbf16>
    tpu.vector_store %arg7[%c64, %c0_34], %42 {strides = array<i32>} : memref<72x1024xbf16, #tpu.memory_space<vmem>>, vector<8x256xbf16>,
    %c1_35 = arith.constant 1 : index
    %c0_36 = arith.constant 0 : index
    %c0_37 = arith.constant 0 : index
    %44 = vector.load %arg1[%c1_35, %c0_36, %c0_37] : memref<4x8x290xbf16, #tpu.memory_space<vmem>>, vector<1x8x256xbf16>
    %45 = vector.shape_cast %44 : vector<1x8x256xbf16> to vector<8x256xbf16>
    %46 = vector.broadcast %3 : vector<1x256xbf16> to vector<8x256xbf16>
    %47 = arith.mulf %45, %46 : vector<8x256xbf16>
    %c0_38 = arith.constant 0 : index
    %c256 = arith.constant 256 : index
    %48 = vector.load %arg7[%c0_38, %c256] : memref<72x1024xbf16, #tpu.memory_space<vmem>>, vector<8x256xbf16>
    tpu.vector_store %arg7[%c0_38, %c256], %47 {strides = array<i32>} : memref<72x1024xbf16, #tpu.memory_space<vmem>>, vector<8x256xbf16>,
    %c1_39 = arith.constant 1 : index
    %c0_40 = arith.constant 0 : index
    %c1_41 = arith.constant 1 : index
    %49 = vector.load %arg1[%c1_39, %c0_40, %c1_41] : memref<4x8x290xbf16, #tpu.memory_space<vmem>>, vector<1x8x256xbf16>
    %50 = vector.shape_cast %49 : vector<1x8x256xbf16> to vector<8x256xbf16>
    %c8_42 = arith.constant 8 : index
    %c256_43 = arith.constant 256 : index
    %51 = vector.load %arg7[%c8_42, %c256_43] : memref<72x1024xbf16, #tpu.memory_space<vmem>>, vector<8x256xbf16>
    tpu.vector_store %arg7[%c8_42, %c256_43], %50 {strides = array<i32>} : memref<72x1024xbf16, #tpu.memory_space<vmem>>, vector<8x256xbf16>,
    %c1_44 = arith.constant 1 : index
    %c0_45 = arith.constant 0 : index
    %c2_46 = arith.constant 2 : index
    %52 = vector.load %arg1[%c1_44, %c0_45, %c2_46] : memref<4x8x290xbf16, #tpu.memory_space<vmem>>, vector<1x8x256xbf16>
    %53 = vector.shape_cast %52 : vector<1x8x256xbf16> to vector<8x256xbf16>
    %54 = vector.broadcast %4 : vector<1x256xbf16> to vector<8x256xbf16>
    %55 = arith.mulf %53, %54 : vector<8x256xbf16>
    %c16_47 = arith.constant 16 : index
    %c256_48 = arith.constant 256 : index
    %56 = vector.load %arg7[%c16_47, %c256_48] : memref<72x1024xbf16, #tpu.memory_space<vmem>>, vector<8x256xbf16>
    tpu.vector_store %arg7[%c16_47, %c256_48], %55 {strides = array<i32>} : memref<72x1024xbf16, #tpu.memory_space<vmem>>, vector<8x256xbf16>,
    %c1_49 = arith.constant 1 : index
    %c0_50 = arith.constant 0 : index
    %c16_51 = arith.constant 16 : index
    %57 = vector.load %arg1[%c1_49, %c0_50, %c16_51] : memref<4x8x290xbf16, #tpu.memory_space<vmem>>, vector<1x8x256xbf16>
    %58 = vector.shape_cast %57 : vector<1x8x256xbf16> to vector<8x256xbf16>
    %59 = vector.broadcast %3 : vector<1x256xbf16> to vector<8x256xbf16>
    %60 = arith.mulf %58, %59 : vector<8x256xbf16>
    %c24_52 = arith.constant 24 : index
    %c256_53 = arith.constant 256 : index
    %61 = vector.load %arg7[%c24_52, %c256_53] : memref<72x1024xbf16, #tpu.memory_space<vmem>>, vector<8x256xbf16>
    tpu.vector_store %arg7[%c24_52, %c256_53], %60 {strides = array<i32>} : memref<72x1024xbf16, #tpu.memory_space<vmem>>, vector<8x256xbf16>,
    %c1_54 = arith.constant 1 : index
    %c0_55 = arith.constant 0 : index
    %c17_56 = arith.constant 17 : index
    %62 = vector.load %arg1[%c1_54, %c0_55, %c17_56] : memref<4x8x290xbf16, #tpu.memory_space<vmem>>, vector<1x8x256xbf16>
    %63 = vector.shape_cast %62 : vector<1x8x256xbf16> to vector<8x256xbf16>
    %c32_57 = arith.constant 32 : index
    %c256_58 = arith.constant 256 : index
    %64 = vector.load %arg7[%c32_57, %c256_58] : memref<72x1024xbf16, #tpu.memory_space<vmem>>, vector<8x256xbf16>
    tpu.vector_store %arg7[%c32_57, %c256_58], %63 {strides = array<i32>} : memref<72x1024xbf16, #tpu.memory_space<vmem>>, vector<8x256xbf16>,
    %c1_59 = arith.constant 1 : index
    %c0_60 = arith.constant 0 : index
    %c18_61 = arith.constant 18 : index
    %65 = vector.load %arg1[%c1_59, %c0_60, %c18_61] : memref<4x8x290xbf16, #tpu.memory_space<vmem>>, vector<1x8x256xbf16>
    %66 = vector.shape_cast %65 : vector<1x8x256xbf16> to vector<8x256xbf16>
    %67 = vector.broadcast %4 : vector<1x256xbf16> to vector<8x256xbf16>
    %68 = arith.mulf %66, %67 : vector<8x256xbf16>
    %c40_62 = arith.constant 40 : index
    %c256_63 = arith.constant 256 : index
    %69 = vector.load %arg7[%c40_62, %c256_63] : memref<72x1024xbf16, #tpu.memory_space<vmem>>, vector<8x256xbf16>
    tpu.vector_store %arg7[%c40_62, %c256_63], %68 {strides = array<i32>} : memref<72x1024xbf16, #tpu.memory_space<vmem>>, vector<8x256xbf16>,
    %c1_64 = arith.constant 1 : index
    %c0_65 = arith.constant 0 : index
    %c32_66 = arith.constant 32 : index
    %70 = vector.load %arg1[%c1_64, %c0_65, %c32_66] : memref<4x8x290xbf16, #tpu.memory_space<vmem>>, vector<1x8x256xbf16>
    %71 = vector.shape_cast %70 : vector<1x8x256xbf16> to vector<8x256xbf16>
    %72 = vector.broadcast %3 : vector<1x256xbf16> to vector<8x256xbf16>
    %73 = arith.mulf %71, %72 : vector<8x256xbf16>
    %c48_67 = arith.constant 48 : index
    %c256_68 = arith.constant 256 : index
    %74 = vector.load %arg7[%c48_67, %c256_68] : memref<72x1024xbf16, #tpu.memory_space<vmem>>, vector<8x256xbf16>
    tpu.vector_store %arg7[%c48_67, %c256_68], %73 {strides = array<i32>} : memref<72x1024xbf16, #tpu.memory_space<vmem>>, vector<8x256xbf16>,
    %c1_69 = arith.constant 1 : index
    %c0_70 = arith.constant 0 : index
    %c33_71 = arith.constant 33 : index
    %75 = vector.load %arg1[%c1_69, %c0_70, %c33_71] : memref<4x8x290xbf16, #tpu.memory_space<vmem>>, vector<1x8x256xbf16>
    %76 = vector.shape_cast %75 : vector<1x8x256xbf16> to vector<8x256xbf16>
    %c56_72 = arith.constant 56 : index
    %c256_73 = arith.constant 256 : index
    %77 = vector.load %arg7[%c56_72, %c256_73] : memref<72x1024xbf16, #tpu.memory_space<vmem>>, vector<8x256xbf16>
    tpu.vector_store %arg7[%c56_72, %c256_73], %76 {strides = array<i32>} : memref<72x1024xbf16, #tpu.memory_space<vmem>>, vector<8x256xbf16>,
    %c1_74 = arith.constant 1 : index
    %c0_75 = arith.constant 0 : index
    %c34_76 = arith.constant 34 : index
    %78 = vector.load %arg1[%c1_74, %c0_75, %c34_76] : memref<4x8x290xbf16, #tpu.memory_space<vmem>>, vector<1x8x256xbf16>
    %79 = vector.shape_cast %78 : vector<1x8x256xbf16> to vector<8x256xbf16>
    %80 = vector.broadcast %4 : vector<1x256xbf16> to vector<8x256xbf16>
    %81 = arith.mulf %79, %80 : vector<8x256xbf16>
    %c64_77 = arith.constant 64 : index
    %c256_78 = arith.constant 256 : index
    %82 = vector.load %arg7[%c64_77, %c256_78] : memref<72x1024xbf16, #tpu.memory_space<vmem>>, vector<8x256xbf16>
    tpu.vector_store %arg7[%c64_77, %c256_78], %81 {strides = array<i32>} : memref<72x1024xbf16, #tpu.memory_space<vmem>>, vector<8x256xbf16>,
    %c2_79 = arith.constant 2 : index
    %c0_80 = arith.constant 0 : index
    %c0_81 = arith.constant 0 : index
    %83 = vector.load %arg1[%c2_79, %c0_80, %c0_81] : memref<4x8x290xbf16, #tpu.memory_space<vmem>>, vector<1x8x256xbf16>
    %84 = vector.shape_cast %83 : vector<1x8x256xbf16> to vector<8x256xbf16>
    %85 = vector.broadcast %3 : vector<1x256xbf16> to vector<8x256xbf16>
    %86 = arith.mulf %84, %85 : vector<8x256xbf16>
    %c0_82 = arith.constant 0 : index
    %c512 = arith.constant 512 : index
    %87 = vector.load %arg7[%c0_82, %c512] : memref<72x1024xbf16, #tpu.memory_space<vmem>>, vector<8x256xbf16>
    tpu.vector_store %arg7[%c0_82, %c512], %86 {strides = array<i32>} : memref<72x1024xbf16, #tpu.memory_space<vmem>>, vector<8x256xbf16>,
    %c2_83 = arith.constant 2 : index
    %c0_84 = arith.constant 0 : index
    %c1_85 = arith.constant 1 : index
    %88 = vector.load %arg1[%c2_83, %c0_84, %c1_85] : memref<4x8x290xbf16, #tpu.memory_space<vmem>>, vector<1x8x256xbf16>
    %89 = vector.shape_cast %88 : vector<1x8x256xbf16> to vector<8x256xbf16>
    %c8_86 = arith.constant 8 : index
    %c512_87 = arith.constant 512 : index
    %90 = vector.load %arg7[%c8_86, %c512_87] : memref<72x1024xbf16, #tpu.memory_space<vmem>>, vector<8x256xbf16>
    tpu.vector_store %arg7[%c8_86, %c512_87], %89 {strides = array<i32>} : memref<72x1024xbf16, #tpu.memory_space<vmem>>, vector<8x256xbf16>,
    %c2_88 = arith.constant 2 : index
    %c0_89 = arith.constant 0 : index
    %c2_90 = arith.constant 2 : index
    %91 = vector.load %arg1[%c2_88, %c0_89, %c2_90] : memref<4x8x290xbf16, #tpu.memory_space<vmem>>, vector<1x8x256xbf16>
    %92 = vector.shape_cast %91 : vector<1x8x256xbf16> to vector<8x256xbf16>
    %93 = vector.broadcast %4 : vector<1x256xbf16> to vector<8x256xbf16>
    %94 = arith.mulf %92, %93 : vector<8x256xbf16>
    %c16_91 = arith.constant 16 : index
    %c512_92 = arith.constant 512 : index
    %95 = vector.load %arg7[%c16_91, %c512_92] : memref<72x1024xbf16, #tpu.memory_space<vmem>>, vector<8x256xbf16>
    tpu.vector_store %arg7[%c16_91, %c512_92], %94 {strides = array<i32>} : memref<72x1024xbf16, #tpu.memory_space<vmem>>, vector<8x256xbf16>,
    %c2_93 = arith.constant 2 : index
    %c0_94 = arith.constant 0 : index
    %c16_95 = arith.constant 16 : index
    %96 = vector.load %arg1[%c2_93, %c0_94, %c16_95] : memref<4x8x290xbf16, #tpu.memory_space<vmem>>, vector<1x8x256xbf16>
    %97 = vector.shape_cast %96 : vector<1x8x256xbf16> to vector<8x256xbf16>
    %98 = vector.broadcast %3 : vector<1x256xbf16> to vector<8x256xbf16>
    %99 = arith.mulf %97, %98 : vector<8x256xbf16>
    %c24_96 = arith.constant 24 : index
    %c512_97 = arith.constant 512 : index
    %100 = vector.load %arg7[%c24_96, %c512_97] : memref<72x1024xbf16, #tpu.memory_space<vmem>>, vector<8x256xbf16>
    tpu.vector_store %arg7[%c24_96, %c512_97], %99 {strides = array<i32>} : memref<72x1024xbf16, #tpu.memory_space<vmem>>, vector<8x256xbf16>,
    %c2_98 = arith.constant 2 : index
    %c0_99 = arith.constant 0 : index
    %c17_100 = arith.constant 17 : index
    %101 = vector.load %arg1[%c2_98, %c0_99, %c17_100] : memref<4x8x290xbf16, #tpu.memory_space<vmem>>, vector<1x8x256xbf16>
    %102 = vector.shape_cast %101 : vector<1x8x256xbf16> to vector<8x256xbf16>
    %c32_101 = arith.constant 32 : index
    %c512_102 = arith.constant 512 : index
    %103 = vector.load %arg7[%c32_101, %c512_102] : memref<72x1024xbf16, #tpu.memory_space<vmem>>, vector<8x256xbf16>
    tpu.vector_store %arg7[%c32_101, %c512_102], %102 {strides = array<i32>} : memref<72x1024xbf16, #tpu.memory_space<vmem>>, vector<8x256xbf16>,
    %c2_103 = arith.constant 2 : index
    %c0_104 = arith.constant 0 : index
    %c18_105 = arith.constant 18 : index
    %104 = vector.load %arg1[%c2_103, %c0_104, %c18_105] : memref<4x8x290xbf16, #tpu.memory_space<vmem>>, vector<1x8x256xbf16>
    %105 = vector.shape_cast %104 : vector<1x8x256xbf16> to vector<8x256xbf16>
    %106 = vector.broadcast %4 : vector<1x256xbf16> to vector<8x256xbf16>
    %107 = arith.mulf %105, %106 : vector<8x256xbf16>
    %c40_106 = arith.constant 40 : index
    %c512_107 = arith.constant 512 : index
    %108 = vector.load %arg7[%c40_106, %c512_107] : memref<72x1024xbf16, #tpu.memory_space<vmem>>, vector<8x256xbf16>
    tpu.vector_store %arg7[%c40_106, %c512_107], %107 {strides = array<i32>} : memref<72x1024xbf16, #tpu.memory_space<vmem>>, vector<8x256xbf16>,
    %c2_108 = arith.constant 2 : index
    %c0_109 = arith.constant 0 : index
    %c32_110 = arith.constant 32 : index
    %109 = vector.load %arg1[%c2_108, %c0_109, %c32_110] : memref<4x8x290xbf16, #tpu.memory_space<vmem>>, vector<1x8x256xbf16>
    %110 = vector.shape_cast %109 : vector<1x8x256xbf16> to vector<8x256xbf16>
    %111 = vector.broadcast %3 : vector<1x256xbf16> to vector<8x256xbf16>
    %112 = arith.mulf %110, %111 : vector<8x256xbf16>
    %c48_111 = arith.constant 48 : index
    %c512_112 = arith.constant 512 : index
    %113 = vector.load %arg7[%c48_111, %c512_112] : memref<72x1024xbf16, #tpu.memory_space<vmem>>, vector<8x256xbf16>
    tpu.vector_store %arg7[%c48_111, %c512_112], %112 {strides = array<i32>} : memref<72x1024xbf16, #tpu.memory_space<vmem>>, vector<8x256xbf16>,
    %c2_113 = arith.constant 2 : index
    %c0_114 = arith.constant 0 : index
    %c33_115 = arith.constant 33 : index
    %114 = vector.load %arg1[%c2_113, %c0_114, %c33_115] : memref<4x8x290xbf16, #tpu.memory_space<vmem>>, vector<1x8x256xbf16>
    %115 = vector.shape_cast %114 : vector<1x8x256xbf16> to vector<8x256xbf16>
    %c56_116 = arith.constant 56 : index
    %c512_117 = arith.constant 512 : index
    %116 = vector.load %arg7[%c56_116, %c512_117] : memref<72x1024xbf16, #tpu.memory_space<vmem>>, vector<8x256xbf16>
    tpu.vector_store %arg7[%c56_116, %c512_117], %115 {strides = array<i32>} : memref<72x1024xbf16, #tpu.memory_space<vmem>>, vector<8x256xbf16>,
    %c2_118 = arith.constant 2 : index
    %c0_119 = arith.constant 0 : index
    %c34_120 = arith.constant 34 : index
    %117 = vector.load %arg1[%c2_118, %c0_119, %c34_120] : memref<4x8x290xbf16, #tpu.memory_space<vmem>>, vector<1x8x256xbf16>
    %118 = vector.shape_cast %117 : vector<1x8x256xbf16> to vector<8x256xbf16>
    %119 = vector.broadcast %4 : vector<1x256xbf16> to vector<8x256xbf16>
    %120 = arith.mulf %118, %119 : vector<8x256xbf16>
    %c64_121 = arith.constant 64 : index
    %c512_122 = arith.constant 512 : index
    %121 = vector.load %arg7[%c64_121, %c512_122] : memref<72x1024xbf16, #tpu.memory_space<vmem>>, vector<8x256xbf16>
    tpu.vector_store %arg7[%c64_121, %c512_122], %120 {strides = array<i32>} : memref<72x1024xbf16, #tpu.memory_space<vmem>>, vector<8x256xbf16>,
    %c3 = arith.constant 3 : index
    %c0_123 = arith.constant 0 : index
    %c0_124 = arith.constant 0 : index
    %122 = vector.load %arg1[%c3, %c0_123, %c0_124] : memref<4x8x290xbf16, #tpu.memory_space<vmem>>, vector<1x8x256xbf16>
    %123 = vector.shape_cast %122 : vector<1x8x256xbf16> to vector<8x256xbf16>
    %124 = vector.broadcast %3 : vector<1x256xbf16> to vector<8x256xbf16>
    %125 = arith.mulf %123, %124 : vector<8x256xbf16>
    %c0_125 = arith.constant 0 : index
    %c768 = arith.constant 768 : index
    %126 = vector.load %arg7[%c0_125, %c768] : memref<72x1024xbf16, #tpu.memory_space<vmem>>, vector<8x256xbf16>
    tpu.vector_store %arg7[%c0_125, %c768], %125 {strides = array<i32>} : memref<72x1024xbf16, #tpu.memory_space<vmem>>, vector<8x256xbf16>,
    %c3_126 = arith.constant 3 : index
    %c0_127 = arith.constant 0 : index
    %c1_128 = arith.constant 1 : index
    %127 = vector.load %arg1[%c3_126, %c0_127, %c1_128] : memref<4x8x290xbf16, #tpu.memory_space<vmem>>, vector<1x8x256xbf16>
    %128 = vector.shape_cast %127 : vector<1x8x256xbf16> to vector<8x256xbf16>
    %c8_129 = arith.constant 8 : index
    %c768_130 = arith.constant 768 : index
    %129 = vector.load %arg7[%c8_129, %c768_130] : memref<72x1024xbf16, #tpu.memory_space<vmem>>, vector<8x256xbf16>
    tpu.vector_store %arg7[%c8_129, %c768_130], %128 {strides = array<i32>} : memref<72x1024xbf16, #tpu.memory_space<vmem>>, vector<8x256xbf16>,
    %c3_131 = arith.constant 3 : index
    %c0_132 = arith.constant 0 : index
    %c2_133 = arith.constant 2 : index
    %130 = vector.load %arg1[%c3_131, %c0_132, %c2_133] : memref<4x8x290xbf16, #tpu.memory_space<vmem>>, vector<1x8x256xbf16>
    %131 = vector.shape_cast %130 : vector<1x8x256xbf16> to vector<8x256xbf16>
    %132 = vector.broadcast %4 : vector<1x256xbf16> to vector<8x256xbf16>
    %133 = arith.mulf %131, %132 : vector<8x256xbf16>
    %c16_134 = arith.constant 16 : index
    %c768_135 = arith.constant 768 : index
    %134 = vector.load %arg7[%c16_134, %c768_135] : memref<72x1024xbf16, #tpu.memory_space<vmem>>, vector<8x256xbf16>
    tpu.vector_store %arg7[%c16_134, %c768_135], %133 {strides = array<i32>} : memref<72x1024xbf16, #tpu.memory_space<vmem>>, vector<8x256xbf16>,
    %c3_136 = arith.constant 3 : index
    %c0_137 = arith.constant 0 : index
    %c16_138 = arith.constant 16 : index
    %135 = vector.load %arg1[%c3_136, %c0_137, %c16_138] : memref<4x8x290xbf16, #tpu.memory_space<vmem>>, vector<1x8x256xbf16>
    %136 = vector.shape_cast %135 : vector<1x8x256xbf16> to vector<8x256xbf16>
    %137 = vector.broadcast %3 : vector<1x256xbf16> to vector<8x256xbf16>
    %138 = arith.mulf %136, %137 : vector<8x256xbf16>
    %c24_139 = arith.constant 24 : index
    %c768_140 = arith.constant 768 : index
    %139 = vector.load %arg7[%c24_139, %c768_140] : memref<72x1024xbf16, #tpu.memory_space<vmem>>, vector<8x256xbf16>
    tpu.vector_store %arg7[%c24_139, %c768_140], %138 {strides = array<i32>} : memref<72x1024xbf16, #tpu.memory_space<vmem>>, vector<8x256xbf16>,
    %c3_141 = arith.constant 3 : index
    %c0_142 = arith.constant 0 : index
    %c17_143 = arith.constant 17 : index
    %140 = vector.load %arg1[%c3_141, %c0_142, %c17_143] : memref<4x8x290xbf16, #tpu.memory_space<vmem>>, vector<1x8x256xbf16>
    %141 = vector.shape_cast %140 : vector<1x8x256xbf16> to vector<8x256xbf16>
    %c32_144 = arith.constant 32 : index
    %c768_145 = arith.constant 768 : index
    %142 = vector.load %arg7[%c32_144, %c768_145] : memref<72x1024xbf16, #tpu.memory_space<vmem>>, vector<8x256xbf16>
    tpu.vector_store %arg7[%c32_144, %c768_145], %141 {strides = array<i32>} : memref<72x1024xbf16, #tpu.memory_space<vmem>>, vector<8x256xbf16>,
    %c3_146 = arith.constant 3 : index
    %c0_147 = arith.constant 0 : index
    %c18_148 = arith.constant 18 : index
    %143 = vector.load %arg1[%c3_146, %c0_147, %c18_148] : memref<4x8x290xbf16, #tpu.memory_space<vmem>>, vector<1x8x256xbf16>
    %144 = vector.shape_cast %143 : vector<1x8x256xbf16> to vector<8x256xbf16>
    %145 = vector.broadcast %4 : vector<1x256xbf16> to vector<8x256xbf16>
    %146 = arith.mulf %144, %145 : vector<8x256xbf16>
    %c40_149 = arith.constant 40 : index
    %c768_150 = arith.constant 768 : index
    %147 = vector.load %arg7[%c40_149, %c768_150] : memref<72x1024xbf16, #tpu.memory_space<vmem>>, vector<8x256xbf16>
    tpu.vector_store %arg7[%c40_149, %c768_150], %146 {strides = array<i32>} : memref<72x1024xbf16, #tpu.memory_space<vmem>>, vector<8x256xbf16>,
    %c3_151 = arith.constant 3 : index
    %c0_152 = arith.constant 0 : index
    %c32_153 = arith.constant 32 : index
    %148 = vector.load %arg1[%c3_151, %c0_152, %c32_153] : memref<4x8x290xbf16, #tpu.memory_space<vmem>>, vector<1x8x256xbf16>
    %149 = vector.shape_cast %148 : vector<1x8x256xbf16> to vector<8x256xbf16>
    %150 = vector.broadcast %3 : vector<1x256xbf16> to vector<8x256xbf16>
    %151 = arith.mulf %149, %150 : vector<8x256xbf16>
    %c48_154 = arith.constant 48 : index
    %c768_155 = arith.constant 768 : index
    %152 = vector.load %arg7[%c48_154, %c768_155] : memref<72x1024xbf16, #tpu.memory_space<vmem>>, vector<8x256xbf16>
    tpu.vector_store %arg7[%c48_154, %c768_155], %151 {strides = array<i32>} : memref<72x1024xbf16, #tpu.memory_space<vmem>>, vector<8x256xbf16>,
    %c3_156 = arith.constant 3 : index
    %c0_157 = arith.constant 0 : index
    %c33_158 = arith.constant 33 : index
    %153 = vector.load %arg1[%c3_156, %c0_157, %c33_158] : memref<4x8x290xbf16, #tpu.memory_space<vmem>>, vector<1x8x256xbf16>
    %154 = vector.shape_cast %153 : vector<1x8x256xbf16> to vector<8x256xbf16>
    %c56_159 = arith.constant 56 : index
    %c768_160 = arith.constant 768 : index
    %155 = vector.load %arg7[%c56_159, %c768_160] : memref<72x1024xbf16, #tpu.memory_space<vmem>>, vector<8x256xbf16>
    tpu.vector_store %arg7[%c56_159, %c768_160], %154 {strides = array<i32>} : memref<72x1024xbf16, #tpu.memory_space<vmem>>, vector<8x256xbf16>,
    %c3_161 = arith.constant 3 : index
    %c0_162 = arith.constant 0 : index
    %c34_163 = arith.constant 34 : index
    %156 = vector.load %arg1[%c3_161, %c0_162, %c34_163] : memref<4x8x290xbf16, #tpu.memory_space<vmem>>, vector<1x8x256xbf16>
    %157 = vector.shape_cast %156 : vector<1x8x256xbf16> to vector<8x256xbf16>
    %158 = vector.broadcast %4 : vector<1x256xbf16> to vector<8x256xbf16>
    %159 = arith.mulf %157, %158 : vector<8x256xbf16>
    %c64_164 = arith.constant 64 : index
    %c768_165 = arith.constant 768 : index
    %160 = vector.load %arg7[%c64_164, %c768_165] : memref<72x1024xbf16, #tpu.memory_space<vmem>>, vector<8x256xbf16>
    tpu.vector_store %arg7[%c64_164, %c768_165], %159 {strides = array<i32>} : memref<72x1024xbf16, #tpu.memory_space<vmem>>, vector<8x256xbf16>,
    %c0_166 = arith.constant 0 : index
    %c0_167 = arith.constant 0 : index
    %161 = vector.load %arg2[%c0_166, %c0_167] : memref<16x72xbf16, #tpu.memory_space<vmem>>, vector<16x72xbf16>
    %c0_168 = arith.constant 0 : index
    %c0_169 = arith.constant 0 : index
    %162 = vector.load %arg7[%c0_168, %c0_169] : memref<72x1024xbf16, #tpu.memory_space<vmem>>, vector<72x1024xbf16>
    %cst = arith.constant dense<0.000000e+00> : vector<16x1024xf32>
    %163 = tpu.matmul %161, %162, %cst {dimension_numbers = #tpu.dot_dimension_numbers<[1], [0], [0], [1], [0, 0, 1, 1], [], []>} : vector<16x72xbf16>, vector<72x1024xbf16>, vector<16x1024xf32> -> vector<16x1024xf32>
    %c0_170 = arith.constant 0 : index
    %c0_171 = arith.constant 0 : index
    %164 = vector.load %arg8[%c0_170, %c0_171] : memref<16x1xf32, #tpu.memory_space<vmem>>, vector<16x1xf32>
    %cst_172 = arith.constant dense<0.000000e+00> : vector<16xf32>
    %165 = vector.multi_reduction <add>, %163, %cst_172 [1] : vector<16x1024xf32> to vector<16xf32>
    %166 = vector.shape_cast %165 : vector<16xf32> to vector<16x1xf32>
    %167 = arith.addf %164, %166 : vector<16x1xf32>
    %c0_173 = arith.constant 0 : index
    %c0_174 = arith.constant 0 : index
    %168 = vector.load %arg8[%c0_173, %c0_174] : memref<16x1xf32, #tpu.memory_space<vmem>>, vector<16x1xf32>
    tpu.vector_store %arg8[%c0_173, %c0_174], %167 {strides = array<i32>} : memref<16x1xf32, #tpu.memory_space<vmem>>, vector<16x1xf32>,
    %c0_175 = arith.constant 0 : index
    %c0_176 = arith.constant 0 : index
    %169 = vector.load %arg9[%c0_175, %c0_176] : memref<16x1xf32, #tpu.memory_space<vmem>>, vector<16x1xf32>
    %170 = arith.mulf %163, %163 : vector<16x1024xf32>
    %cst_177 = arith.constant dense<0.000000e+00> : vector<16xf32>
    %171 = vector.multi_reduction <add>, %170, %cst_177 [1] : vector<16x1024xf32> to vector<16xf32>
    %172 = vector.shape_cast %171 : vector<16xf32> to vector<16x1xf32>
    %173 = arith.addf %169, %172 : vector<16x1xf32>
    %c0_178 = arith.constant 0 : index
    %c0_179 = arith.constant 0 : index
    %174 = vector.load %arg9[%c0_178, %c0_179] : memref<16x1xf32, #tpu.memory_space<vmem>>, vector<16x1xf32>
    tpu.vector_store %arg9[%c0_178, %c0_179], %173 {strides = array<i32>} : memref<16x1xf32, #tpu.memory_space<vmem>>, vector<16x1xf32>,
    %c4_i32 = arith.constant 4 : i32
    %175 = arith.muli %arg0, %c4_i32 : i32
    %176 = vector.extract_strided_slice %163 {offsets = [0, 0], sizes = [16, 256], strides = [1, 1]} : vector<16x1024xf32> to vector<16x256xf32>
    %c0_i32_180 = arith.constant 0 : i32
    %177 = arith.addi %175, %c0_i32_180 : i32
    %178 = arith.index_cast %177 : i32 to index
    %c0_181 = arith.constant 0 : index
    %c0_182 = arith.constant 0 : index
    %179 = vector.load %arg6[%178, %c0_181, %c0_182] : memref<4x16x256xf32, #tpu.memory_space<vmem>>, vector<1x16x256xf32>
    %180 = vector.shape_cast %179 : vector<1x16x256xf32> to vector<16x256xf32>
    %181 = vector.shape_cast %176 : vector<16x256xf32> to vector<1x16x256xf32>
    tpu.vector_store %arg6[%178, %c0_181, %c0_182], %181 {strides = array<i32>} : memref<4x16x256xf32, #tpu.memory_space<vmem>>, vector<1x16x256xf32>,
    %182 = vector.extract_strided_slice %163 {offsets = [0, 256], sizes = [16, 256], strides = [1, 1]} : vector<16x1024xf32> to vector<16x256xf32>
    %c1_i32 = arith.constant 1 : i32
    %183 = arith.addi %175, %c1_i32 : i32
    %184 = arith.index_cast %183 : i32 to index
    %c0_183 = arith.constant 0 : index
    %c0_184 = arith.constant 0 : index
    %185 = vector.load %arg6[%184, %c0_183, %c0_184] : memref<4x16x256xf32, #tpu.memory_space<vmem>>, vector<1x16x256xf32>
    %186 = vector.shape_cast %185 : vector<1x16x256xf32> to vector<16x256xf32>
    %187 = vector.shape_cast %182 : vector<16x256xf32> to vector<1x16x256xf32>
    tpu.vector_store %arg6[%184, %c0_183, %c0_184], %187 {strides = array<i32>} : memref<4x16x256xf32, #tpu.memory_space<vmem>>, vector<1x16x256xf32>,
    %188 = vector.extract_strided_slice %163 {offsets = [0, 512], sizes = [16, 256], strides = [1, 1]} : vector<16x1024xf32> to vector<16x256xf32>
    %c2_i32 = arith.constant 2 : i32
    %189 = arith.addi %175, %c2_i32 : i32
    %190 = arith.index_cast %189 : i32 to index
    %c0_185 = arith.constant 0 : index
    %c0_186 = arith.constant 0 : index
    %191 = vector.load %arg6[%190, %c0_185, %c0_186] : memref<4x16x256xf32, #tpu.memory_space<vmem>>, vector<1x16x256xf32>
    %192 = vector.shape_cast %191 : vector<1x16x256xf32> to vector<16x256xf32>
    %193 = vector.shape_cast %188 : vector<16x256xf32> to vector<1x16x256xf32>
    tpu.vector_store %arg6[%190, %c0_185, %c0_186], %193 {strides = array<i32>} : memref<4x16x256xf32, #tpu.memory_space<vmem>>, vector<1x16x256xf32>,
    %194 = vector.extract_strided_slice %163 {offsets = [0, 768], sizes = [16, 256], strides = [1, 1]} : vector<16x1024xf32> to vector<16x256xf32>
    %c3_i32 = arith.constant 3 : i32
    %195 = arith.addi %175, %c3_i32 : i32
    %196 = arith.index_cast %195 : i32 to index
    %c0_187 = arith.constant 0 : index
    %c0_188 = arith.constant 0 : index
    %197 = vector.load %arg6[%196, %c0_187, %c0_188] : memref<4x16x256xf32, #tpu.memory_space<vmem>>, vector<1x16x256xf32>
    %198 = vector.shape_cast %197 : vector<1x16x256xf32> to vector<16x256xf32>
    %199 = vector.shape_cast %194 : vector<16x256xf32> to vector<1x16x256xf32>
    tpu.vector_store %arg6[%196, %c0_187, %c0_188], %199 {strides = array<i32>} : memref<4x16x256xf32, #tpu.memory_space<vmem>>, vector<1x16x256xf32>,
    %c0_i32_189 = arith.constant 0 : i32
    %200 = arith.cmpi eq, %arg0, %c0_i32_189 : i32
    %201 = arith.extui %200 : i1 to i32
    %c0_i32_190 = arith.constant 0 : i32
    %202 = arith.cmpi ne, %201, %c0_i32_190 : i32
    scf.if %202 {
      %c0_191 = arith.constant 0 : index
      %c0_192 = arith.constant 0 : index
      %203 = vector.load %arg8[%c0_191, %c0_192] : memref<16x1xf32, #tpu.memory_space<vmem>>, vector<16x1xf32>
      %cst_193 = arith.constant 9.765625E-4 : f32
      %204 = vector.broadcast %cst_193 : f32 to vector<16x1xf32>
      %205 = arith.mulf %203, %204 : vector<16x1xf32>
      %c0_194 = arith.constant 0 : index
      %c0_195 = arith.constant 0 : index
      %206 = vector.load %arg9[%c0_194, %c0_195] : memref<16x1xf32, #tpu.memory_space<vmem>>, vector<16x1xf32>
      %cst_196 = arith.constant 9.765625E-4 : f32
      %207 = vector.broadcast %cst_196 : f32 to vector<16x1xf32>
      %208 = arith.mulf %206, %207 : vector<16x1xf32>
      %209 = arith.mulf %205, %205 : vector<16x1xf32>
      %210 = arith.subf %208, %209 : vector<16x1xf32>
      %cst_197 = arith.constant 0.000000e+00 : f32
      %211 = vector.broadcast %cst_197 : f32 to vector<16x1xf32>
      %212 = arith.maximumf %210, %211 : vector<16x1xf32>
      %c0_198 = arith.constant 0 : index
      %c0_199 = arith.constant 0 : index
      %213 = vector.load %arg4[%c0_198, %c0_199] : memref<16x1xf32, #tpu.memory_space<vmem>>, vector<16x1xf32>
      %cst_200 = arith.constant 9.99999974E-6 : f32
      %214 = vector.broadcast %cst_200 : f32 to vector<16x1xf32>
      %215 = arith.addf %212, %214 : vector<16x1xf32>
      %216 = math.rsqrt %215 : vector<16x1xf32>
      %217 = arith.mulf %213, %216 : vector<16x1xf32>
      %c0_201 = arith.constant 0 : index
      %c0_202 = arith.constant 0 : index
      %218 = vector.load %arg5[%c0_201, %c0_202] : memref<16x1xf32, #tpu.memory_space<vmem>>, vector<16x1xf32>
      %219 = arith.mulf %205, %217 : vector<16x1xf32>
      %220 = arith.subf %218, %219 : vector<16x1xf32>
      %c0_203 = arith.constant 0 : index
      %c0_204 = arith.constant 0 : index
      %c0_205 = arith.constant 0 : index
      %221 = vector.load %arg6[%c0_203, %c0_204, %c0_205] : memref<4x16x256xf32, #tpu.memory_space<vmem>>, vector<4x16x256xf32>
      %222 = vector.shape_cast %217 : vector<16x1xf32> to vector<1x16x1xf32>
      %223 = vector.broadcast %222 : vector<1x16x1xf32> to vector<4x16x256xf32>
      %224 = arith.mulf %221, %223 : vector<4x16x256xf32>
      %225 = vector.shape_cast %220 : vector<16x1xf32> to vector<1x16x1xf32>
      %226 = vector.broadcast %225 : vector<1x16x1xf32> to vector<4x16x256xf32>
      %227 = arith.addf %224, %226 : vector<4x16x256xf32>
      %c0_206 = arith.constant 0 : index
      %c0_207 = arith.constant 0 : index
      %c0_208 = arith.constant 0 : index
      %228 = vector.load %arg6[%c0_206, %c0_207, %c0_208] : memref<4x16x256xf32, #tpu.memory_space<vmem>>, vector<4x16x256xf32>
      tpu.vector_store %arg6[%c0_206, %c0_207, %c0_208], %227 {strides = array<i32>} : memref<4x16x256xf32, #tpu.memory_space<vmem>>, vector<4x16x256xf32>,
    } else {
    }
    return
  }
  func.func @transform_0(%arg0: i32) -> (i32, i32, i32) {
    %c0_i32 = arith.constant 0 : i32
    %c0_i32_0 = arith.constant 0 : i32
    %c0_i32_1 = arith.constant 0 : i32
    return %arg0, %c0_i32, %c0_i32_0 : i32, i32, i32
  }
  func.func @transform_1(%arg0: i32) -> (i32, i32) {
    %c0_i32 = arith.constant 0 : i32
    %c0_i32_0 = arith.constant 0 : i32
    %c0_i32_1 = arith.constant 0 : i32
    return %c0_i32, %c0_i32_0 : i32, i32
  }
  func.func @transform_2(%arg0: i32) -> (i32, i32) {
    %c0_i32 = arith.constant 0 : i32
    %c0_i32_0 = arith.constant 0 : i32
    %c0_i32_1 = arith.constant 0 : i32
    return %c0_i32, %c0_i32_0 : i32, i32
  }
  func.func @transform_3(%arg0: i32) -> (i32, i32) {
    %c0_i32 = arith.constant 0 : i32
    %c0_i32_0 = arith.constant 0 : i32
    %c0_i32_1 = arith.constant 0 : i32
    return %c0_i32, %c0_i32_0 : i32, i32
  }
  func.func @transform_4(%arg0: i32) -> (i32, i32) {
    %c0_i32 = arith.constant 0 : i32
    %c0_i32_0 = arith.constant 0 : i32
    %c0_i32_1 = arith.constant 0 : i32
    return %c0_i32, %c0_i32_0 : i32, i32
  }
  func.func @transform_5(%arg0: i32) -> (i32, i32, i32) {
    %c0_i32 = arith.constant 0 : i32
    %c0_i32_0 = arith.constant 0 : i32
    %c0_i32_1 = arith.constant 0 : i32
    %c0_i32_2 = arith.constant 0 : i32
    return %c0_i32, %c0_i32_0, %c0_i32_1 : i32, i32, i32
  }
}

</mosaic_0001>

<llo_original>
// kernel: conv_block_forward.1
$region0: #{conv_block_forward.1}
  #allocation0 [shape = 'u32[]', space=smem, size = 0x4, offset = 0x4, fixed_abs, tag = 'smem constant byte address 0x4 - core index']
  #allocation1 [shape = 'u32[144,128]{1,0:T(1,128)}', space=vmem, size = 0x12000, scoped, tag = 'internal scratch']
  #allocation2 [shape = 'bf16[72,1024]{1,0:T(8,128)(2,1)}', space=vmem, size = 0x24000, scoped, tag = 'scratch operand']
  #allocation3 [shape = 'f32[16,1]{1,0:T(8,128)}', space=vmem, size = 0x2000, scoped, tag = 'scratch operand']
  #allocation4 [shape = 'f32[16,1]{1,0:T(8,128)}', space=vmem, size = 0x2000, scoped, tag = 'scratch operand']
  %s0 = inlined_call_operand.vmem [shape: bf16[4,8,290], index: 0, kind: input, shape index: {}]
  %s1 = inlined_call_operand.vmem [shape: bf16[16,72], index: 1, kind: input, shape index: {}]
  %s2 = inlined_call_operand.vmem [shape: bf16[2,256], index: 2, kind: input, shape index: {}]
  %s3 = inlined_call_operand.vmem [shape: f32[16,1], index: 3, kind: input, shape index: {}]
  %s4 = inlined_call_operand.vmem [shape: f32[16,1], index: 4, kind: input, shape index: {}]
  %s5 = inlined_call_operand.vmem [shape: f32[4,16,256], index: 5, kind: output, shape index: {}]
  %s6 = sld [smem:[#allocation0]]
  $region38: #{conv_block_forward.1} parent=0
    _
  %s8 = ssub.s32 1, %s6
  %s9 = scalar_select 0, %s8, %s6
  // Predicated region
  $region2: #{conv_block_forward.1} parent=0 // pred_check
    _
  $region3: #{conv_block_forward.1} parent=0 // pred_check_branch
    %11 = sbr.rel (0) target = $region5
  $region4: #{conv_block_forward.1} parent=0 // pred_region
    _
  $region5: #{conv_block_forward.1} parent=0 // pred_fallthru
    _
  // Predicated region
  $region6: #{conv_block_forward.1} parent=0 // pred_check
    _
  $region7: #{conv_block_forward.1} parent=0 // pred_check_branch
    %13 = sbr.rel (0) target = $region9
  $region8: #{conv_block_forward.1} parent=0 // pred_region
    _
  $region9: #{conv_block_forward.1} parent=0 // pred_fallthru
    _
  // Predicated region
  $region10: #{conv_block_forward.1} parent=0 // pred_check
    _
  $region11: #{conv_block_forward.1} parent=0 // pred_check_branch
    %15 = sbr.rel (0) target = $region13
  $region12: #{conv_block_forward.1} parent=0 // pred_region
    _
  $region13: #{conv_block_forward.1} parent=0 // pred_fallthru
    _
  // Predicated region
  $region14: #{conv_block_forward.1} parent=0 // pred_check
    _
  $region15: #{conv_block_forward.1} parent=0 // pred_check_branch
    %17 = sbr.rel (0) target = $region17
  $region16: #{conv_block_forward.1} parent=0 // pred_region
    _
  $region17: #{conv_block_forward.1} parent=0 // pred_fallthru
    _
  // Predicated region
  $region18: #{conv_block_forward.1} parent=0 // pred_check
    _
  $region19: #{conv_block_forward.1} parent=0 // pred_check_branch
    %19 = sbr.rel (0) target = $region21
  $region20: #{conv_block_forward.1} parent=0 // pred_region
    _
  $region21: #{conv_block_forward.1} parent=0 // pred_fallthru
    _
  %p21 = scmp.eq.s32.totalorder 0, 0
  // Predicated region
  $region22: #{conv_block_forward.1} parent=0 // pred_check
    %p22 = pneg %p21
  $region23: #{conv_block_forward.1} parent=0 // pred_check_branch
    %24 = sbr.rel (%p22) target = $region25
  $region24: #{conv_block_forward.1} parent=0 // pred_region
    %vm25 = vcmask 7168
    %26 = vst.msk [vmem:[#allocation3] sm:$0xff] %vm25, 0.0
    %27 = vst.msk [vmem:[#allocation3 + $0x8] sm:$0xff] %vm25, 0.0
    %28 = vst.msk [vmem:[#allocation4] sm:$0xff] %vm25, 0.0
    %29 = vst.msk [vmem:[#allocation4 + $0x8] sm:$0xff] %vm25, 0.0
  $region25: #{conv_block_forward.1} parent=0 // pred_fallthru
    _
  %v30 = vld [vmem:[%s2] sm:$0x3]
  %v31 = vld [vmem:[%s0] sm:$0xff]
  %v34 = vunpack.c.l.s4 1966171168
  %v35 = vunpack.c.0.s8 %v34
  %v36 = vlaneseq
  %v37 = vshrl.u32 %v36, 7
  %v38 = vsub.s32 %v35, %v37
  %v39 = vrot.slane %v30, %v38
  %v40 = vcombine.high %v39, %v39
  %v42 = vunpack.c.l.s4 1966171168
  %v43 = vunpack.c.0.s8 %v42
  %v44 = vlaneseq
  %v45 = vshrl.u32 %v44, 7
  %v46 = vsub.s32 %v43, %v45
  %v47 = vrot.slane %v39, %v46
  %v49 = vunpack.c.l.s4 1966171168
  %v50 = vunpack.c.0.s8 %v49
  %v51 = vlaneseq
  %v52 = vshrl.u32 %v51, 7
  %v53 = vsub.s32 %v50, %v52
  %v54 = vrot.slane %v40, %v53
  %v56 = vpack.i.b16 %v47, %v47
  %v58 = vlaneseq
  %v59 = vshrl.u32 %v58, 7
  %v60 = vsub.s32 0, %v59
  %v61 = vrot.slane %v56, %v60
  %v63 = vpack.i.b16 %v54, %v54
  %v65 = vlaneseq
  %v66 = vshrl.u32 %v65, 7
  %v67 = vsub.s32 0, %v66
  %v68 = vrot.slane %v63, %v67
  %v71 = vunpack.c.l.b16 %v61
  %v72 = vunpack.c.l.b16 %v68
  %v73 = vpack.c.b16 %v72, %v71
  %v75 = vmul.bf16 %v31, %v73
  %76 = vst [vmem:[#allocation2] sm:$0xff] %v75
  %v77 = vld [vmem:[%s0] sm:$0xff]
  %v78 = vld [vmem:[%s0 + $0x8] sm:$0xf]
  %81 = vrot.lane.b32.xlu0 %v77, 127
  %v82 = vpop.permute.xlu0 %81
  %83 = vrot.lane.b32.xlu0 %v78, 127
  %v84 = vpop.permute.xlu0 %83
  %v85 = vrot.slane %v82, 4
  %v86 = vrot.slane %v84, 4
  %vm87 = vcmask 1043456
  %v88 = vsel %vm87, %v85, %v86
  %vm89 = vcmask 1039360
  %v90 = vsel %vm89, %v82, %v88
  %92 = vst [vmem:[#allocation2 + $0x20] sm:$0xff] %v90
  %v93 = vld [vmem:[%s0] sm:$0xff]
  %v94 = vld [vmem:[%s0 + $0x8] sm:$0xf]
  %v95 = vshrl.u32 %v47, 16
  %v96 = vpack.i.b16 %v95, %v95
  %v98 = vlaneseq
  %v99 = vshrl.u32 %v98, 7
  %v100 = vsub.s32 0, %v99
  %v101 = vrot.slane %v96, %v100
  %v102 = vshrl.u32 %v54, 16
  %v103 = vpack.i.b16 %v102, %v102
  %v105 = vlaneseq
  %v106 = vshrl.u32 %v105, 7
  %v107 = vsub.s32 0, %v106
  %v108 = vrot.slane %v103, %v107
  %v111 = vunpack.c.l.b16 %v101
  %v112 = vunpack.c.l.b16 %v108
  %v113 = vpack.c.b16 %v112, %v111
  %114 = vrot.lane.b32.xlu0 %v113, 2
  %v115 = vpop.permute.xlu0 %114
  %v116 = vrot.slane %v115, 4
  %vm117 = vcmask 15360
  %v118 = vsel %vm117, %v116, %v115
  %v121 = vmul.bf16 %v93, %v118
  %v122 = vmul.bf16 %v94, %v116
  %125 = vrot.lane.b32.xlu0 %v121, 126
  %v126 = vpop.permute.xlu0 %125
  %127 = vrot.lane.b32.xlu0 %v122, 126
  %v128 = vpop.permute.xlu0 %127
  %v129 = vrot.slane %v126, 4
  %v130 = vrot.slane %v128, 4
  %v131 = vsel %vm87, %v129, %v130
  %vm132 = vcmask 1031168
  %v133 = vsel %vm132, %v126, %v131
  %135 = vst [vmem:[#allocation2 + $0x40] sm:$0xff] %v133
  %v136 = vld [vmem:[%s0] sm:$0xff]
  %v137 = vld [vmem:[%s0 + $0x8] sm:$0xf]
  %138 = vrot.lane.b32.xlu0 %v73, 16
  %v139 = vpop.permute.xlu0 %138
  %v140 = vrot.slane %v139, 4
  %vm141 = vcmask 130048
  %v142 = vsel %vm141, %v140, %v139
  %v145 = vmul.bf16 %v136, %v142
  %v146 = vmul.bf16 %v137, %v140
  %149 = vrot.lane.b32.xlu0 %v145, 112
  %v150 = vpop.permute.xlu0 %149
  %151 = vrot.lane.b32.xlu0 %v146, 112
  %v152 = vpop.permute.xlu0 %151
  %v153 = vrot.slane %v150, 4
  %v154 = vrot.slane %v152, 4
  %v155 = vsel %vm87, %v153, %v154
  %vm156 = vcmask 916480
  %v157 = vsel %vm156, %v150, %v155
  %159 = vst [vmem:[#allocation2 + $0x60] sm:$0xff] %v157
  %v160 = vld [vmem:[%s0] sm:$0xff]
  %v161 = vld [vmem:[%s0 + $0x8] sm:$0xf]
  %164 = vrot.lane.b32.xlu0 %v160, 111
  %v165 = vpop.permute.xlu0 %164
  %166 = vrot.lane.b32.xlu0 %v161, 111
  %v167 = vpop.permute.xlu0 %166
  %v168 = vrot.slane %v165, 4
  %v169 = vrot.slane %v167, 4
  %v170 = vsel %vm87, %v168, %v169
  %vm171 = vcmask 908288
  %v172 = vsel %vm171, %v165, %v170
  %174 = vst [vmem:[#allocation2 + $0x80] sm:$0xff] %v172
  %v175 = vld [vmem:[%s0] sm:$0xff]
  %v176 = vld [vmem:[%s0 + $0x8] sm:$0xf]
  %177 = vrot.lane.b32.xlu0 %v113, 18
  %v178 = vpop.permute.xlu0 %177
  %v179 = vrot.slane %v178, 4
  %vm180 = vcmask 146432
  %v181 = vsel %vm180, %v179, %v178
  %v184 = vmul.bf16 %v175, %v181
  %v185 = vmul.bf16 %v176, %v179
  %188 = vrot.lane.b32.xlu0 %v184, 110
  %v189 = vpop.permute.xlu0 %188
  %190 = vrot.lane.b32.xlu0 %v185, 110
  %v191 = vpop.permute.xlu0 %190
  %v192 = vrot.slane %v189, 4
  %v193 = vrot.slane %v191, 4
  %v194 = vsel %vm87, %v192, %v193
  %vm195 = vcmask 900096
  %v196 = vsel %vm195, %v189, %v194
  %198 = vst [vmem:[#allocation2 + $0xa0] sm:$0xff] %v196
  %v199 = vld [vmem:[%s0] sm:$0xff]
  %v200 = vld [vmem:[%s0 + $0x8] sm:$0xf]
  %201 = vrot.lane.b32.xlu0 %v73, 32
  %v202 = vpop.permute.xlu0 %201
  %v203 = vrot.slane %v202, 4
  %vm204 = vcmask 261120
  %v205 = vsel %vm204, %v203, %v202
  %v208 = vmul.bf16 %v199, %v205
  %v209 = vmul.bf16 %v200, %v203
  %212 = vrot.lane.b32.xlu0 %v208, 96
  %v213 = vpop.permute.xlu0 %212
  %214 = vrot.lane.b32.xlu0 %v209, 96
  %v215 = vpop.permute.xlu0 %214
  %v216 = vrot.slane %v213, 4
  %v217 = vrot.slane %v215, 4
  %v218 = vsel %vm87, %v216, %v217
  %vm219 = vcmask 785408
  %v220 = vsel %vm219, %v213, %v218
  %222 = vst [vmem:[#allocation2 + $0xc0] sm:$0xff] %v220
  %v223 = vld [vmem:[%s0] sm:$0xff]
  %v224 = vld [vmem:[%s0 + $0x8] sm:$0xf]
  %227 = vrot.lane.b32.xlu0 %v223, 95
  %v228 = vpop.permute.xlu0 %227
  %229 = vrot.lane.b32.xlu0 %v224, 95
  %v230 = vpop.permute.xlu0 %229
  %v231 = vrot.slane %v228, 4
  %v232 = vrot.slane %v230, 4
  %v233 = vsel %vm87, %v231, %v232
  %vm234 = vcmask 777216
  %v235 = vsel %vm234, %v228, %v233
  %237 = vst [vmem:[#allocation2 + $0xe0] sm:$0xff] %v235
  %v238 = vld [vmem:[%s0] sm:$0xff]
  %v239 = vld [vmem:[%s0 + $0x8] sm:$0xf]
  %240 = vrot.lane.b32.xlu0 %v113, 34
  %v241 = vpop.permute.xlu0 %240
  %v242 = vrot.slane %v241, 4
  %vm243 = vcmask 277504
  %v244 = vsel %vm243, %v242, %v241
  %v247 = vmul.bf16 %v238, %v244
  %v248 = vmul.bf16 %v239, %v242
  %251 = vrot.lane.b32.xlu0 %v247, 94
  %v252 = vpop.permute.xlu0 %251
  %253 = vrot.lane.b32.xlu0 %v248, 94
  %v254 = vpop.permute.xlu0 %253
  %v255 = vrot.slane %v252, 4
  %v256 = vrot.slane %v254, 4
  %v257 = vsel %vm87, %v255, %v256
  %vm258 = vcmask 769024
  %v259 = vsel %vm258, %v252, %v257
  %261 = vst [vmem:[#allocation2 + $0x100] sm:$0xff] %v259
  %s262 = scalar_lea.vmem %s0, 12
  %v263 = vld [vmem:[%s262] sm:$0xff]
  %v264 = vmul.bf16 %v263, %v73
  %265 = vst [vmem:[#allocation2 + $0x8] sm:$0xff] %v264
  %v266 = vld [vmem:[%s262] sm:$0xff]
  %v267 = vld [vmem:[%s262 + $0x8] sm:$0xf]
  %270 = vrot.lane.b32.xlu0 %v266, 127
  %v271 = vpop.permute.xlu0 %270
  %272 = vrot.lane.b32.xlu0 %v267, 127
  %v273 = vpop.permute.xlu0 %272
  %v274 = vrot.slane %v271, 4
  %v275 = vrot.slane %v273, 4
  %v276 = vsel %vm87, %v274, %v275
  %v277 = vsel %vm89, %v271, %v276
  %279 = vst [vmem:[#allocation2 + $0x28] sm:$0xff] %v277
  %v280 = vld [vmem:[%s262] sm:$0xff]
  %v281 = vld [vmem:[%s262 + $0x8] sm:$0xf]
  %v282 = vmul.bf16 %v280, %v118
  %v283 = vmul.bf16 %v281, %v116
  %286 = vrot.lane.b32.xlu0 %v282, 126
  %v287 = vpop.permute.xlu0 %286
  %288 = vrot.lane.b32.xlu0 %v283, 126
  %v289 = vpop.permute.xlu0 %288
  %v290 = vrot.slane %v287, 4
  %v291 = vrot.slane %v289, 4
  %v292 = vsel %vm87, %v290, %v291
  %v293 = vsel %vm132, %v287, %v292
  %295 = vst [vmem:[#allocation2 + $0x48] sm:$0xff] %v293
  %v296 = vld [vmem:[%s262] sm:$0xff]
  %v297 = vld [vmem:[%s262 + $0x8] sm:$0xf]
  %v298 = vmul.bf16 %v296, %v142
  %v299 = vmul.bf16 %v297, %v140
  %302 = vrot.lane.b32.xlu0 %v298, 112
  %v303 = vpop.permute.xlu0 %302
  %304 = vrot.lane.b32.xlu0 %v299, 112
  %v305 = vpop.permute.xlu0 %304
  %v306 = vrot.slane %v303, 4
  %v307 = vrot.slane %v305, 4
  %v308 = vsel %vm87, %v306, %v307
  %v309 = vsel %vm156, %v303, %v308
  %311 = vst [vmem:[#allocation2 + $0x68] sm:$0xff] %v309
  %v312 = vld [vmem:[%s262] sm:$0xff]
  %v313 = vld [vmem:[%s262 + $0x8] sm:$0xf]
  %316 = vrot.lane.b32.xlu0 %v312, 111
  %v317 = vpop.permute.xlu0 %316
  %318 = vrot.lane.b32.xlu0 %v313, 111
  %v319 = vpop.permute.xlu0 %318
  %v320 = vrot.slane %v317, 4
  %v321 = vrot.slane %v319, 4
  %v322 = vsel %vm87, %v320, %v321
  %v323 = vsel %vm171, %v317, %v322
  %325 = vst [vmem:[#allocation2 + $0x88] sm:$0xff] %v323
  %v326 = vld [vmem:[%s262] sm:$0xff]
  %v327 = vld [vmem:[%s262 + $0x8] sm:$0xf]
  %v328 = vmul.bf16 %v326, %v181
  %v329 = vmul.bf16 %v327, %v179
  %332 = vrot.lane.b32.xlu0 %v328, 110
  %v333 = vpop.permute.xlu0 %332
  %334 = vrot.lane.b32.xlu0 %v329, 110
  %v335 = vpop.permute.xlu0 %334
  %v336 = vrot.slane %v333, 4
  %v337 = vrot.slane %v335, 4
  %v338 = vsel %vm87, %v336, %v337
  %v339 = vsel %vm195, %v333, %v338
  %341 = vst [vmem:[#allocation2 + $0xa8] sm:$0xff] %v339
  %v342 = vld [vmem:[%s262] sm:$0xff]
  %v343 = vld [vmem:[%s262 + $0x8] sm:$0xf]
  %v344 = vmul.bf16 %v342, %v205
  %v345 = vmul.bf16 %v343, %v203
  %348 = vrot.lane.b32.xlu0 %v344, 96
  %v349 = vpop.permute.xlu0 %348
  %350 = vrot.lane.b32.xlu0 %v345, 96
  %v351 = vpop.permute.xlu0 %350
  %v352 = vrot.slane %v349, 4
  %v353 = vrot.slane %v351, 4
  %v354 = vsel %vm87, %v352, %v353
  %v355 = vsel %vm219, %v349, %v354
  %357 = vst [vmem:[#allocation2 + $0xc8] sm:$0xff] %v355
  %v358 = vld [vmem:[%s262] sm:$0xff]
  %v359 = vld [vmem:[%s262 + $0x8] sm:$0xf]
  %362 = vrot.lane.b32.xlu0 %v358, 95
  %v363 = vpop.permute.xlu0 %362
  %364 = vrot.lane.b32.xlu0 %v359, 95
  %v365 = vpop.permute.xlu0 %364
  %v366 = vrot.slane %v363, 4
  %v367 = vrot.slane %v365, 4
  %v368 = vsel %vm87, %v366, %v367
  %v369 = vsel %vm234, %v363, %v368
  %371 = vst [vmem:[#allocation2 + $0xe8] sm:$0xff] %v369
  %v372 = vld [vmem:[%s262] sm:$0xff]
  %v373 = vld [vmem:[%s262 + $0x8] sm:$0xf]
  %v374 = vmul.bf16 %v372, %v244
  %v375 = vmul.bf16 %v373, %v242
  %378 = vrot.lane.b32.xlu0 %v374, 94
  %v379 = vpop.permute.xlu0 %378
  %380 = vrot.lane.b32.xlu0 %v375, 94
  %v381 = vpop.permute.xlu0 %380
  %v382 = vrot.slane %v379, 4
  %v383 = vrot.slane %v381, 4
  %v384 = vsel %vm87, %v382, %v383
  %v385 = vsel %vm258, %v379, %v384
  %387 = vst [vmem:[#allocation2 + $0x108] sm:$0xff] %v385
  %s388 = scalar_lea.vmem %s0, 24
  %v389 = vld [vmem:[%s388] sm:$0xff]
  %v390 = vmul.bf16 %v389, %v73
  %391 = vst [vmem:[#allocation2 + $0x10] sm:$0xff] %v390
  %v392 = vld [vmem:[%s388] sm:$0xff]
  %v393 = vld [vmem:[%s388 + $0x8] sm:$0xf]
  %396 = vrot.lane.b32.xlu0 %v392, 127
  %v397 = vpop.permute.xlu0 %396
  %398 = vrot.lane.b32.xlu0 %v393, 127
  %v399 = vpop.permute.xlu0 %398
  %v400 = vrot.slane %v397, 4
  %v401 = vrot.slane %v399, 4
  %v402 = vsel %vm87, %v400, %v401
  %v403 = vsel %vm89, %v397, %v402
  %405 = vst [vmem:[#allocation2 + $0x30] sm:$0xff] %v403
  %v406 = vld [vmem:[%s388] sm:$0xff]
  %v407 = vld [vmem:[%s388 + $0x8] sm:$0xf]
  %v408 = vmul.bf16 %v406, %v118
  %v409 = vmul.bf16 %v407, %v116
  %412 = vrot.lane.b32.xlu0 %v408, 126
  %v413 = vpop.permute.xlu0 %412
  %414 = vrot.lane.b32.xlu0 %v409, 126
  %v415 = vpop.permute.xlu0 %414
  %v416 = vrot.slane %v413, 4
  %v417 = vrot.slane %v415, 4
  %v418 = vsel %vm87, %v416, %v417
  %v419 = vsel %vm132, %v413, %v418
  %421 = vst [vmem:[#allocation2 + $0x50] sm:$0xff] %v419
  %v422 = vld [vmem:[%s388] sm:$0xff]
  %v423 = vld [vmem:[%s388 + $0x8] sm:$0xf]
  %v424 = vmul.bf16 %v422, %v142
  %v425 = vmul.bf16 %v423, %v140
  %428 = vrot.lane.b32.xlu0 %v424, 112
  %v429 = vpop.permute.xlu0 %428
  %430 = vrot.lane.b32.xlu0 %v425, 112
  %v431 = vpop.permute.xlu0 %430
  %v432 = vrot.slane %v429, 4
  %v433 = vrot.slane %v431, 4
  %v434 = vsel %vm87, %v432, %v433
  %v435 = vsel %vm156, %v429, %v434
  %437 = vst [vmem:[#allocation2 + $0x70] sm:$0xff] %v435
  %v438 = vld [vmem:[%s388] sm:$0xff]
  %v439 = vld [vmem:[%s388 + $0x8] sm:$0xf]
  %442 = vrot.lane.b32.xlu0 %v438, 111
  %v443 = vpop.permute.xlu0 %442
  %444 = vrot.lane.b32.xlu0 %v439, 111
  %v445 = vpop.permute.xlu0 %444
  %v446 = vrot.slane %v443, 4
  %v447 = vrot.slane %v445, 4
  %v448 = vsel %vm87, %v446, %v447
  %v449 = vsel %vm171, %v443, %v448
  %451 = vst [vmem:[#allocation2 + $0x90] sm:$0xff] %v449
  %v452 = vld [vmem:[%s388] sm:$0xff]
  %v453 = vld [vmem:[%s388 + $0x8] sm:$0xf]
  %v454 = vmul.bf16 %v452, %v181
  %v455 = vmul.bf16 %v453, %v179
  %458 = vrot.lane.b32.xlu0 %v454, 110
  %v459 = vpop.permute.xlu0 %458
  %460 = vrot.lane.b32.xlu0 %v455, 110
  %v461 = vpop.permute.xlu0 %460
  %v462 = vrot.slane %v459, 4
  %v463 = vrot.slane %v461, 4
  %v464 = vsel %vm87, %v462, %v463
  %v465 = vsel %vm195, %v459, %v464
  %467 = vst [vmem:[#allocation2 + $0xb0] sm:$0xff] %v465
  %v468 = vld [vmem:[%s388] sm:$0xff]
  %v469 = vld [vmem:[%s388 + $0x8] sm:$0xf]
  %v470 = vmul.bf16 %v468, %v205
  %v471 = vmul.bf16 %v469, %v203
  %474 = vrot.lane.b32.xlu0 %v470, 96
  %v475 = vpop.permute.xlu0 %474
  %476 = vrot.lane.b32.xlu0 %v471, 96
  %v477 = vpop.permute.xlu0 %476
  %v478 = vrot.slane %v475, 4
  %v479 = vrot.slane %v477, 4
  %v480 = vsel %vm87, %v478, %v479
  %v481 = vsel %vm219, %v475, %v480
  %483 = vst [vmem:[#allocation2 + $0xd0] sm:$0xff] %v481
  %v484 = vld [vmem:[%s388] sm:$0xff]
  %v485 = vld [vmem:[%s388 + $0x8] sm:$0xf]
  %488 = vrot.lane.b32.xlu0 %v484, 95
  %v489 = vpop.permute.xlu0 %488
  %490 = vrot.lane.b32.xlu0 %v485, 95
  %v491 = vpop.permute.xlu0 %490
  %v492 = vrot.slane %v489, 4
  %v493 = vrot.slane %v491, 4
  %v494 = vsel %vm87, %v492, %v493
  %v495 = vsel %vm234, %v489, %v494
  %497 = vst [vmem:[#allocation2 + $0xf0] sm:$0xff] %v495
  %v498 = vld [vmem:[%s388] sm:$0xff]
  %v499 = vld [vmem:[%s388 + $0x8] sm:$0xf]
  %v500 = vmul.bf16 %v498, %v244
  %v501 = vmul.bf16 %v499, %v242
  %504 = vrot.lane.b32.xlu0 %v500, 94
  %v505 = vpop.permute.xlu0 %504
  %506 = vrot.lane.b32.xlu0 %v501, 94
  %v507 = vpop.permute.xlu0 %506
  %v508 = vrot.slane %v505, 4
  %v509 = vrot.slane %v507, 4
  %v510 = vsel %vm87, %v508, %v509
  %v511 = vsel %vm258, %v505, %v510
  %513 = vst [vmem:[#allocation2 + $0x110] sm:$0xff] %v511
  %s514 = scalar_lea.vmem %s0, 36
  %v515 = vld [vmem:[%s514] sm:$0xff]
  %v516 = vmul.bf16 %v515, %v73
  %517 = vst [vmem:[#allocation2 + $0x18] sm:$0xff] %v516
  %v518 = vld [vmem:[%s514] sm:$0xff]
  %v519 = vld [vmem:[%s514 + $0x8] sm:$0xf]
  %522 = vrot.lane.b32.xlu0 %v518, 127
  %v523 = vpop.permute.xlu0 %522
  %524 = vrot.lane.b32.xlu0 %v519, 127
  %v525 = vpop.permute.xlu0 %524
  %v526 = vrot.slane %v523, 4
  %v527 = vrot.slane %v525, 4
  %v528 = vsel %vm87, %v526, %v527
  %v529 = vsel %vm89, %v523, %v528
  %531 = vst [vmem:[#allocation2 + $0x38] sm:$0xff] %v529
  %v532 = vld [vmem:[%s514] sm:$0xff]
  %v533 = vld [vmem:[%s514 + $0x8] sm:$0xf]
  %v534 = vmul.bf16 %v532, %v118
  %v535 = vmul.bf16 %v533, %v116
  %538 = vrot.lane.b32.xlu0 %v534, 126
  %v539 = vpop.permute.xlu0 %538
  %540 = vrot.lane.b32.xlu0 %v535, 126
  %v541 = vpop.permute.xlu0 %540
  %v542 = vrot.slane %v539, 4
  %v543 = vrot.slane %v541, 4
  %v544 = vsel %vm87, %v542, %v543
  %v545 = vsel %vm132, %v539, %v544
  %547 = vst [vmem:[#allocation2 + $0x58] sm:$0xff] %v545
  %v548 = vld [vmem:[%s514] sm:$0xff]
  %v549 = vld [vmem:[%s514 + $0x8] sm:$0xf]
  %v550 = vmul.bf16 %v548, %v142
  %v551 = vmul.bf16 %v549, %v140
  %554 = vrot.lane.b32.xlu0 %v550, 112
  %v555 = vpop.permute.xlu0 %554
  %556 = vrot.lane.b32.xlu0 %v551, 112
  %v557 = vpop.permute.xlu0 %556
  %v558 = vrot.slane %v555, 4
  %v559 = vrot.slane %v557, 4
  %v560 = vsel %vm87, %v558, %v559
  %v561 = vsel %vm156, %v555, %v560
  %563 = vst [vmem:[#allocation2 + $0x78] sm:$0xff] %v561
  %v564 = vld [vmem:[%s514] sm:$0xff]
  %v565 = vld [vmem:[%s514 + $0x8] sm:$0xf]
  %568 = vrot.lane.b32.xlu0 %v564, 111
  %v569 = vpop.permute.xlu0 %568
  %570 = vrot.lane.b32.xlu0 %v565, 111
  %v571 = vpop.permute.xlu0 %570
  %v572 = vrot.slane %v569, 4
  %v573 = vrot.slane %v571, 4
  %v574 = vsel %vm87, %v572, %v573
  %v575 = vsel %vm171, %v569, %v574
  %577 = vst [vmem:[#allocation2 + $0x98] sm:$0xff] %v575
  %v578 = vld [vmem:[%s514] sm:$0xff]
  %v579 = vld [vmem:[%s514 + $0x8] sm:$0xf]
  %v580 = vmul.bf16 %v578, %v181
  %v581 = vmul.bf16 %v579, %v179
  %584 = vrot.lane.b32.xlu0 %v580, 110
  %v585 = vpop.permute.xlu0 %584
  %586 = vrot.lane.b32.xlu0 %v581, 110
  %v587 = vpop.permute.xlu0 %586
  %v588 = vrot.slane %v585, 4
  %v589 = vrot.slane %v587, 4
  %v590 = vsel %vm87, %v588, %v589
  %v591 = vsel %vm195, %v585, %v590
  %593 = vst [vmem:[#allocation2 + $0xb8] sm:$0xff] %v591
  %v594 = vld [vmem:[%s514] sm:$0xff]
  %v595 = vld [vmem:[%s514 + $0x8] sm:$0xf]
  %v596 = vmul.bf16 %v594, %v205
  %v597 = vmul.bf16 %v595, %v203
  %600 = vrot.lane.b32.xlu0 %v596, 96
  %v601 = vpop.permute.xlu0 %600
  %602 = vrot.lane.b32.xlu0 %v597, 96
  %v603 = vpop.permute.xlu0 %602
  %v604 = vrot.slane %v601, 4
  %v605 = vrot.slane %v603, 4
  %v606 = vsel %vm87, %v604, %v605
  %v607 = vsel %vm219, %v601, %v606
  %609 = vst [vmem:[#allocation2 + $0xd8] sm:$0xff] %v607
  %v610 = vld [vmem:[%s514] sm:$0xff]
  %v611 = vld [vmem:[%s514 + $0x8] sm:$0xf]
  %614 = vrot.lane.b32.xlu0 %v610, 95
  %v615 = vpop.permute.xlu0 %614
  %616 = vrot.lane.b32.xlu0 %v611, 95
  %v617 = vpop.permute.xlu0 %616
  %v618 = vrot.slane %v615, 4
  %v619 = vrot.slane %v617, 4
  %v620 = vsel %vm87, %v618, %v619
  %v621 = vsel %vm234, %v615, %v620
  %623 = vst [vmem:[#allocation2 + $0xf8] sm:$0xff] %v621
  %v624 = vld [vmem:[%s514] sm:$0xff]
  %v625 = vld [vmem:[%s514 + $0x8] sm:$0xf]
  %v626 = vmul.bf16 %v624, %v244
  %v627 = vmul.bf16 %v625, %v242
  %630 = vrot.lane.b32.xlu0 %v626, 94
  %v631 = vpop.permute.xlu0 %630
  %632 = vrot.lane.b32.xlu0 %v627, 94
  %v633 = vpop.permute.xlu0 %632
  %v634 = vrot.slane %v631, 4
  %v635 = vrot.slane %v633, 4
  %v636 = vsel %vm87, %v634, %v635
  %v637 = vsel %vm258, %v631, %v636
  %639 = vst [vmem:[#allocation2 + $0x118] sm:$0xff] %v637
  %v640 = vld [vmem:[%s1] sm:$0xf]
  %v641 = vld [vmem:[%s1 + $0x4] sm:$0xf]
  %v642 = vld [vmem:[#allocation2] sm:$0xff]
  %v643 = vld [vmem:[#allocation2 + $0x8] sm:$0xff]
  %v644 = vld [vmem:[#allocation2 + $0x10] sm:$0xff]
  %v645 = vld [vmem:[#allocation2 + $0x18] sm:$0xff]
  %v646 = vld [vmem:[#allocation2 + $0x20] sm:$0xff]
  %v647 = vld [vmem:[#allocation2 + $0x28] sm:$0xff]
  %v648 = vld [vmem:[#allocation2 + $0x30] sm:$0xff]
  %v649 = vld [vmem:[#allocation2 + $0x38] sm:$0xff]
  %v650 = vld [vmem:[#allocation2 + $0x40] sm:$0xff]
  %v651 = vld [vmem:[#allocation2 + $0x48] sm:$0xff]
  %v652 = vld [vmem:[#allocation2 + $0x50] sm:$0xff]
  %v653 = vld [vmem:[#allocation2 + $0x58] sm:$0xff]
  %v654 = vld [vmem:[#allocation2 + $0x60] sm:$0xff]
  %v655 = vld [vmem:[#allocation2 + $0x68] sm:$0xff]
  %v656 = vld [vmem:[#allocation2 + $0x70] sm:$0xff]
  %v657 = vld [vmem:[#allocation2 + $0x78] sm:$0xff]
  %v658 = vld [vmem:[#allocation2 + $0x80] sm:$0xff]
  %v659 = vld [vmem:[#allocation2 + $0x88] sm:$0xff]
  %v660 = vld [vmem:[#allocation2 + $0x90] sm:$0xff]
  %v661 = vld [vmem:[#allocation2 + $0x98] sm:$0xff]
  %v662 = vld [vmem:[#allocation2 + $0xa0] sm:$0xff]
  %v663 = vld [vmem:[#allocation2 + $0xa8] sm:$0xff]
  %v664 = vld [vmem:[#allocation2 + $0xb0] sm:$0xff]
  %v665 = vld [vmem:[#allocation2 + $0xb8] sm:$0xff]
  %v666 = vld [vmem:[#allocation2 + $0xc0] sm:$0xff]
  %v667 = vld [vmem:[#allocation2 + $0xc8] sm:$0xff]
  %v668 = vld [vmem:[#allocation2 + $0xd0] sm:$0xff]
  %v669 = vld [vmem:[#allocation2 + $0xd8] sm:$0xff]
  %v670 = vld [vmem:[#allocation2 + $0xe0] sm:$0xff]
  %v671 = vld [vmem:[#allocation2 + $0xe8] sm:$0xff]
  %v672 = vld [vmem:[#allocation2 + $0xf0] sm:$0xff]
  %v673 = vld [vmem:[#allocation2 + $0xf8] sm:$0xff]
  %v674 = vld [vmem:[#allocation2 + $0x100] sm:$0xff]
  %v675 = vld [vmem:[#allocation2 + $0x108] sm:$0xff]
  %v676 = vld [vmem:[#allocation2 + $0x110] sm:$0xff]
  %v677 = vld [vmem:[#allocation2 + $0x118] sm:$0xff]
  %v680 = vunpack.c.l.b16 %v640
  %v681 = vunpack.c.l.b16 %v641
  %v682 = vpack.c.b16 %v681, %v680
  %v719 = vunpack.c.l.b16 %v642
  %v720 = vunpack.c.h.b16 %v642
  %v721 = vunpack.c.l.b16 %v643
  %v722 = vunpack.c.h.b16 %v643
  %v723 = vunpack.c.l.b16 %v644
  %v724 = vunpack.c.h.b16 %v644
  %v725 = vunpack.c.l.b16 %v645
  %v726 = vunpack.c.h.b16 %v645
  %v727 = vunpack.c.l.b16 %v646
  %v728 = vunpack.c.h.b16 %v646
  %v729 = vunpack.c.l.b16 %v647
  %v730 = vunpack.c.h.b16 %v647
  %v731 = vunpack.c.l.b16 %v648
  %v732 = vunpack.c.h.b16 %v648
  %v733 = vunpack.c.l.b16 %v649
  %v734 = vunpack.c.h.b16 %v649
  %v735 = vunpack.c.l.b16 %v650
  %v736 = vunpack.c.h.b16 %v650
  %v737 = vunpack.c.l.b16 %v651
  %v738 = vunpack.c.h.b16 %v651
  %v739 = vunpack.c.l.b16 %v652
  %v740 = vunpack.c.h.b16 %v652
  %v741 = vunpack.c.l.b16 %v653
  %v742 = vunpack.c.h.b16 %v653
  %v743 = vunpack.c.l.b16 %v654
  %v744 = vunpack.c.h.b16 %v654
  %v745 = vunpack.c.l.b16 %v655
  %v746 = vunpack.c.h.b16 %v655
  %v747 = vunpack.c.l.b16 %v656
  %v748 = vunpack.c.h.b16 %v656
  %v749 = vunpack.c.l.b16 %v657
  %v750 = vunpack.c.h.b16 %v657
  %v751 = vunpack.c.l.b16 %v658
  %v752 = vunpack.c.h.b16 %v658
  %v753 = vunpack.c.l.b16 %v659
  %v754 = vunpack.c.h.b16 %v659
  %v755 = vunpack.c.l.b16 %v660
  %v756 = vunpack.c.h.b16 %v660
  %v757 = vunpack.c.l.b16 %v661
  %v758 = vunpack.c.h.b16 %v661
  %v759 = vunpack.c.l.b16 %v662
  %v760 = vunpack.c.h.b16 %v662
  %v761 = vunpack.c.l.b16 %v663
  %v762 = vunpack.c.h.b16 %v663
  %v763 = vunpack.c.l.b16 %v664
  %v764 = vunpack.c.h.b16 %v664
  %v765 = vunpack.c.l.b16 %v665
  %v766 = vunpack.c.h.b16 %v665
  %v767 = vunpack.c.l.b16 %v666
  %v768 = vunpack.c.h.b16 %v666
  %v769 = vunpack.c.l.b16 %v667
  %v770 = vunpack.c.h.b16 %v667
  %v771 = vunpack.c.l.b16 %v668
  %v772 = vunpack.c.h.b16 %v668
  %v773 = vunpack.c.l.b16 %v669
  %v774 = vunpack.c.h.b16 %v669
  %v775 = vunpack.c.l.b16 %v670
  %v776 = vunpack.c.h.b16 %v670
  %v777 = vunpack.c.l.b16 %v671
  %v778 = vunpack.c.h.b16 %v671
  %v779 = vunpack.c.l.b16 %v672
  %v780 = vunpack.c.h.b16 %v672
  %v781 = vunpack.c.l.b16 %v673
  %v782 = vunpack.c.h.b16 %v673
  %v783 = vunpack.c.l.b16 %v674
  %v784 = vunpack.c.h.b16 %v674
  %v785 = vunpack.c.l.b16 %v675
  %v786 = vunpack.c.h.b16 %v675
  %v787 = vunpack.c.l.b16 %v676
  %v788 = vunpack.c.h.b16 %v676
  %v789 = vunpack.c.l.b16 %v677
  %v790 = vunpack.c.h.b16 %v677
  %v791 = vpack.c.b16 %v727, %v719
  %v792 = vpack.c.b16 %v728, %v720
  %v793 = vpack.c.b16 %v729, %v721
  %v794 = vpack.c.b16 %v730, %v722
  %v795 = vpack.c.b16 %v731, %v723
  %v796 = vpack.c.b16 %v732, %v724
  %v797 = vpack.c.b16 %v733, %v725
  %v798 = vpack.c.b16 %v734, %v726
  %v799 = vpack.c.b16 %v743, %v735
  %v800 = vpack.c.b16 %v744, %v736
  %v801 = vpack.c.b16 %v745, %v737
  %v802 = vpack.c.b16 %v746, %v738
  %v803 = vpack.c.b16 %v747, %v739
  %v804 = vpack.c.b16 %v748, %v740
  %v805 = vpack.c.b16 %v749, %v741
  %v806 = vpack.c.b16 %v750, %v742
  %v807 = vpack.c.b16 %v759, %v751
  %v808 = vpack.c.b16 %v760, %v752
  %v809 = vpack.c.b16 %v761, %v753
  %v810 = vpack.c.b16 %v762, %v754
  %v811 = vpack.c.b16 %v763, %v755
  %v812 = vpack.c.b16 %v764, %v756
  %v813 = vpack.c.b16 %v765, %v757
  %v814 = vpack.c.b16 %v766, %v758
  %v815 = vpack.c.b16 %v775, %v767
  %v816 = vpack.c.b16 %v776, %v768
  %v817 = vpack.c.b16 %v777, %v769
  %v818 = vpack.c.b16 %v778, %v770
  %v819 = vpack.c.b16 %v779, %v771
  %v820 = vpack.c.b16 %v780, %v772
  %v821 = vpack.c.b16 %v781, %v773
  %v822 = vpack.c.b16 %v782, %v774
  %v823 = vpack.c.b16 %v783, %v783
  %v824 = vpack.c.b16 %v784, %v784
  %v825 = vpack.c.b16 %v785, %v785
  %v826 = vpack.c.b16 %v786, %v786
  %v827 = vpack.c.b16 %v787, %v787
  %v828 = vpack.c.b16 %v788, %v788
  %v829 = vpack.c.b16 %v789, %v789
  %v830 = vpack.c.b16 %v790, %v790
  %vm863 = vcmask 588800
  %v865 = vsel %vm863, %v682, 0
  %vm867 = vcmask 1043456
  %v869 = vsel %vm867, %v823, 0
  %v872 = vsel %vm867, %v824, 0
  %v875 = vsel %vm867, %v825, 0
  %v878 = vsel %vm867, %v826, 0
  %v881 = vsel %vm867, %v827, 0
  %v884 = vsel %vm867, %v828, 0
  %v887 = vsel %vm867, %v829, 0
  %v890 = vsel %vm867, %v830, 0
  %892 = vmatprep.subr.bf16.mxu0 %v792
  %893 = vmatpush1.bf16.msra.mxu0 %v791
  %894 = vmatprep.subr.bf16.mxu0 %v800
  %895 = vmatpush1.bf16.msra.mxu0 %v799
  %896 = vmatprep.subr.bf16.mxu0 %v808
  %897 = vmatpush1.bf16.msra.mxu0 %v807
  %898 = vmatprep.subr.bf16.mxu0 %v816
  %899 = vmatpush1.bf16.msra.mxu0 %v815
  %900 = vmatprep.subr.bf16.mxu0 %v872
  %901 = vmatpush1.bf16.msra.mxu0 %v869
  %902 = vmatprep.subr.bf16.mxu0 0
  %903 = vmatpush1.bf16.msra.mxu0 0
  %904 = vmatprep.subr.bf16.mxu0 0
  %905 = vmatpush1.bf16.msra.mxu0 0
  %906 = vmatprep.subr.bf16.mxu0 0
  %907 = vmatpush1.bf16.msra.mxu0 0
  %908 = vmatprep.subr.bf16.mxu0 0
  %909 = vmatpush1.bf16.msra.mxu0 0
  %910 = vmatprep.subr.bf16.mxu0 0
  %911 = vmatpush1.bf16.msra.mxu0 0
  %912 = vmatprep.subr.bf16.mxu0 0
  %913 = vmatpush1.bf16.msra.mxu0 0
  %914 = vmatprep.subr.bf16.mxu0 0
  %915 = vmatpush1.bf16.msra.mxu0 0
  %916 = vmatprep.subr.bf16.mxu0 0
  %917 = vmatpush1.bf16.msra.mxu0 0
  %918 = vmatprep.subr.bf16.mxu0 0
  %919 = vmatpush1.bf16.msra.mxu0 0
  %920 = vmatprep.subr.bf16.mxu0 0
  %921 = vmatpush1.bf16.msra.mxu0 0
  %922 = vmatprep.subr.bf16.mxu0 0
  %923 = vmatpush1.bf16.msra.mxu0 0
  %924 = vmatprep.mubr.bf16.mxu0 0
  %925 = vmatmul.mubr.bf16.gmra.mrb[0].mxu0 %v865
  %v926 = vpop.f32.mrb[0].mxu0
  %v927 = vadd.f32 0.0, %v926
  %v928 = vpop.f32.mrb[0].mxu0
  %v929 = vadd.f32 0.0, %v928
  %v930 = vpop.f32.mrb[0].mxu0
  %v931 = vadd.f32 0.0, %v930
  %v932 = vpop.f32.mrb[0].mxu0
  %v933 = vadd.f32 0.0, %v932
  %934 = vdwg.mxu0
  %935 = vmatprep.subr.bf16.mxu0 %v794
  %936 = vmatpush1.bf16.msra.mxu0 %v793
  %937 = vmatprep.subr.bf16.mxu0 %v802
  %938 = vmatpush1.bf16.msra.mxu0 %v801
  %939 = vmatprep.subr.bf16.mxu0 %v810
  %940 = vmatpush1.bf16.msra.mxu0 %v809
  %941 = vmatprep.subr.bf16.mxu0 %v818
  %942 = vmatpush1.bf16.msra.mxu0 %v817
  %943 = vmatprep.subr.bf16.mxu0 %v878
  %944 = vmatpush1.bf16.msra.mxu0 %v875
  %945 = vmatprep.subr.bf16.mxu0 0
  %946 = vmatpush1.bf16.msra.mxu0 0
  %947 = vmatprep.subr.bf16.mxu0 0
  %948 = vmatpush1.bf16.msra.mxu0 0
  %949 = vmatprep.subr.bf16.mxu0 0
  %950 = vmatpush1.bf16.msra.mxu0 0
  %951 = vmatprep.subr.bf16.mxu0 0
  %952 = vmatpush1.bf16.msra.mxu0 0
  %953 = vmatprep.subr.bf16.mxu0 0
  %954 = vmatpush1.bf16.msra.mxu0 0
  %955 = vmatprep.subr.bf16.mxu0 0
  %956 = vmatpush1.bf16.msra.mxu0 0
  %957 = vmatprep.subr.bf16.mxu0 0
  %958 = vmatpush1.bf16.msra.mxu0 0
  %959 = vmatprep.subr.bf16.mxu0 0
  %960 = vmatpush1.bf16.msra.mxu0 0
  %961 = vmatprep.subr.bf16.mxu0 0
  %962 = vmatpush1.bf16.msra.mxu0 0
  %963 = vmatprep.subr.bf16.mxu0 0
  %964 = vmatpush1.bf16.msra.mxu0 0
  %965 = vmatprep.subr.bf16.mxu0 0
  %966 = vmatpush1.bf16.msra.mxu0 0
  %967 = vmatprep.mubr.bf16.mxu0 0
  %968 = vmatmul.mubr.bf16.gmra.mrb[0].mxu0 %v865
  %v969 = vpop.f32.mrb[0].mxu0
  %v970 = vadd.f32 0.0, %v969
  %v971 = vpop.f32.mrb[0].mxu0
  %v972 = vadd.f32 0.0, %v971
  %v973 = vpop.f32.mrb[0].mxu0
  %v974 = vadd.f32 0.0, %v973
  %v975 = vpop.f32.mrb[0].mxu0
  %v976 = vadd.f32 0.0, %v975
  %977 = vdwg.mxu0
  %978 = vmatprep.subr.bf16.mxu0 %v796
  %979 = vmatpush1.bf16.msra.mxu0 %v795
  %980 = vmatprep.subr.bf16.mxu0 %v804
  %981 = vmatpush1.bf16.msra.mxu0 %v803
  %982 = vmatprep.subr.bf16.mxu0 %v812
  %983 = vmatpush1.bf16.msra.mxu0 %v811
  %984 = vmatprep.subr.bf16.mxu0 %v820
  %985 = vmatpush1.bf16.msra.mxu0 %v819
  %986 = vmatprep.subr.bf16.mxu0 %v884
  %987 = vmatpush1.bf16.msra.mxu0 %v881
  %988 = vmatprep.subr.bf16.mxu0 0
  %989 = vmatpush1.bf16.msra.mxu0 0
  %990 = vmatprep.subr.bf16.mxu0 0
  %991 = vmatpush1.bf16.msra.mxu0 0
  %992 = vmatprep.subr.bf16.mxu0 0
  %993 = vmatpush1.bf16.msra.mxu0 0
  %994 = vmatprep.subr.bf16.mxu0 0
  %995 = vmatpush1.bf16.msra.mxu0 0
  %996 = vmatprep.subr.bf16.mxu0 0
  %997 = vmatpush1.bf16.msra.mxu0 0
  %998 = vmatprep.subr.bf16.mxu0 0
  %999 = vmatpush1.bf16.msra.mxu0 0
  %1000 = vmatprep.subr.bf16.mxu0 0
  %1001 = vmatpush1.bf16.msra.mxu0 0
  %1002 = vmatprep.subr.bf16.mxu0 0
  %1003 = vmatpush1.bf16.msra.mxu0 0
  %1004 = vmatprep.subr.bf16.mxu0 0
  %1005 = vmatpush1.bf16.msra.mxu0 0
  %1006 = vmatprep.subr.bf16.mxu0 0
  %1007 = vmatpush1.bf16.msra.mxu0 0
  %1008 = vmatprep.subr.bf16.mxu0 0
  %1009 = vmatpush1.bf16.msra.mxu0 0
  %1010 = vmatprep.mubr.bf16.mxu0 0
  %1011 = vmatmul.mubr.bf16.gmra.mrb[0].mxu0 %v865
  %v1012 = vpop.f32.mrb[0].mxu0
  %v1013 = vadd.f32 0.0, %v1012
  %v1014 = vpop.f32.mrb[0].mxu0
  %v1015 = vadd.f32 0.0, %v1014
  %v1016 = vpop.f32.mrb[0].mxu0
  %v1017 = vadd.f32 0.0, %v1016
  %v1018 = vpop.f32.mrb[0].mxu0
  %v1019 = vadd.f32 0.0, %v1018
  %1020 = vdwg.mxu0
  %1021 = vmatprep.subr.bf16.mxu0 %v798
  %1022 = vmatpush1.bf16.msra.mxu0 %v797
  %1023 = vmatprep.subr.bf16.mxu0 %v806
  %1024 = vmatpush1.bf16.msra.mxu0 %v805
  %1025 = vmatprep.subr.bf16.mxu0 %v814
  %1026 = vmatpush1.bf16.msra.mxu0 %v813
  %1027 = vmatprep.subr.bf16.mxu0 %v822
  %1028 = vmatpush1.bf16.msra.mxu0 %v821
  %1029 = vmatprep.subr.bf16.mxu0 %v890
  %1030 = vmatpush1.bf16.msra.mxu0 %v887
  %1031 = vmatprep.subr.bf16.mxu0 0
  %1032 = vmatpush1.bf16.msra.mxu0 0
  %1033 = vmatprep.subr.bf16.mxu0 0
  %1034 = vmatpush1.bf16.msra.mxu0 0
  %1035 = vmatprep.subr.bf16.mxu0 0
  %1036 = vmatpush1.bf16.msra.mxu0 0
  %1037 = vmatprep.subr.bf16.mxu0 0
  %1038 = vmatpush1.bf16.msra.mxu0 0
  %1039 = vmatprep.subr.bf16.mxu0 0
  %1040 = vmatpush1.bf16.msra.mxu0 0
  %1041 = vmatprep.subr.bf16.mxu0 0
  %1042 = vmatpush1.bf16.msra.mxu0 0
  %1043 = vmatprep.subr.bf16.mxu0 0
  %1044 = vmatpush1.bf16.msra.mxu0 0
  %1045 = vmatprep.subr.bf16.mxu0 0
  %1046 = vmatpush1.bf16.msra.mxu0 0
  %1047 = vmatprep.subr.bf16.mxu0 0
  %1048 = vmatpush1.bf16.msra.mxu0 0
  %1049 = vmatprep.subr.bf16.mxu0 0
  %1050 = vmatpush1.bf16.msra.mxu0 0
  %1051 = vmatprep.subr.bf16.mxu0 0
  %1052 = vmatpush1.bf16.msra.mxu0 0
  %1053 = vmatprep.mubr.bf16.mxu0 0
  %1054 = vmatmul.mubr.bf16.gmra.mrb[0].mxu0 %v865
  %v1055 = vpop.f32.mrb[0].mxu0
  %v1056 = vadd.f32 0.0, %v1055
  %v1057 = vpop.f32.mrb[0].mxu0
  %v1058 = vadd.f32 0.0, %v1057
  %v1059 = vpop.f32.mrb[0].mxu0
  %v1060 = vadd.f32 0.0, %v1059
  %v1061 = vpop.f32.mrb[0].mxu0
  %v1062 = vadd.f32 0.0, %v1061
  %1063 = vdwg.mxu0
  %v1064 = vld [vmem:[#allocation3] sm:$0xff]
  %v1065 = vld [vmem:[#allocation3 + $0x8] sm:$0xff]
  %v1066 = vadd.f32 %v927, %v929
  %v1067 = vadd.f32 %v1066, %v970
  %v1068 = vadd.f32 %v1067, %v972
  %v1069 = vadd.f32 %v1068, %v1013
  %v1070 = vadd.f32 %v1069, %v1015
  %v1071 = vadd.f32 %v1070, %v1056
  %v1072 = vadd.f32 %v1071, %v1058
  %1073 = vadd.xlane.f32.xlu0 %v1072
  %v1074 = vpop.xlane.xlu0 %1073
  %v1075 = vadd.f32 %v931, %v933
  %v1076 = vadd.f32 %v1075, %v974
  %v1077 = vadd.f32 %v1076, %v976
  %v1078 = vadd.f32 %v1077, %v1017
  %v1079 = vadd.f32 %v1078, %v1019
  %v1080 = vadd.f32 %v1079, %v1060
  %v1081 = vadd.f32 %v1080, %v1062
  %1082 = vadd.xlane.f32.xlu0 %v1081
  %v1083 = vpop.xlane.xlu0 %1082
  %v1084 = vadd.f32 %v1064, %v1074
  %v1085 = vadd.f32 %v1065, %v1083
  %vm1086 = vcmask 7168
  %1087 = vst.msk [vmem:[#allocation3] sm:$0xff] %vm1086, %v1084
  %1088 = vst.msk [vmem:[#allocation3 + $0x8] sm:$0xff] %vm1086, %v1085
  %v1089 = vld [vmem:[#allocation4] sm:$0xff]
  %v1090 = vld [vmem:[#allocation4 + $0x8] sm:$0xff]
  %v1091 = vmul.f32 %v927, %v927
  %v1092 = vmul.f32 %v929, %v929
  %v1093 = vmul.f32 %v970, %v970
  %v1094 = vmul.f32 %v972, %v972
  %v1095 = vmul.f32 %v1013, %v1013
  %v1096 = vmul.f32 %v1015, %v1015
  %v1097 = vmul.f32 %v1056, %v1056
  %v1098 = vmul.f32 %v1058, %v1058
  %v1099 = vmul.f32 %v931, %v931
  %v1100 = vmul.f32 %v933, %v933
  %v1101 = vmul.f32 %v974, %v974
  %v1102 = vmul.f32 %v976, %v976
  %v1103 = vmul.f32 %v1017, %v1017
  %v1104 = vmul.f32 %v1019, %v1019
  %v1105 = vmul.f32 %v1060, %v1060
  %v1106 = vmul.f32 %v1062, %v1062
  %v1107 = vadd.f32 %v1091, %v1092
  %v1108 = vadd.f32 %v1107, %v1093
  %v1109 = vadd.f32 %v1108, %v1094
  %v1110 = vadd.f32 %v1109, %v1095
  %v1111 = vadd.f32 %v1110, %v1096
  %v1112 = vadd.f32 %v1111, %v1097
  %v1113 = vadd.f32 %v1112, %v1098
  %1114 = vadd.xlane.f32.xlu0 %v1113
  %v1115 = vpop.xlane.xlu0 %1114
  %v1116 = vadd.f32 %v1099, %v1100
  %v1117 = vadd.f32 %v1116, %v1101
  %v1118 = vadd.f32 %v1117, %v1102
  %v1119 = vadd.f32 %v1118, %v1103
  %v1120 = vadd.f32 %v1119, %v1104
  %v1121 = vadd.f32 %v1120, %v1105
  %v1122 = vadd.f32 %v1121, %v1106
  %1123 = vadd.xlane.f32.xlu0 %v1122
  %v1124 = vpop.xlane.xlu0 %1123
  %v1125 = vadd.f32 %v1089, %v1115
  %v1126 = vadd.f32 %v1090, %v1124
  %1127 = vst.msk [vmem:[#allocation4] sm:$0xff] %vm1086, %v1125
  %1128 = vst.msk [vmem:[#allocation4 + $0x8] sm:$0xff] %vm1086, %v1126
  %s1129 = smul.u32 0, 4
  %s1130 = smul.u32 %s1129, 4
  %s1131 = smul.addr %s1130, 8
  %s1132 = scalar_lea.vmem %s5, %s1131
  %1133 = vst [vmem:[%s1132] sm:$0xff] %v927
  %1134 = vst [vmem:[%s1132 + $0x8] sm:$0xff] %v929
  %1135 = vst [vmem:[%s1132 + $0x10] sm:$0xff] %v931
  %1136 = vst [vmem:[%s1132 + $0x18] sm:$0xff] %v933
  %s1137 = sadd.s32 %s1129, 1
  %s1138 = smul.u32 %s1137, 4
  %s1139 = smul.addr %s1138, 8
  %s1140 = scalar_lea.vmem %s5, %s1139
  %1141 = vst [vmem:[%s1140] sm:$0xff] %v970
  %1142 = vst [vmem:[%s1140 + $0x8] sm:$0xff] %v972
  %1143 = vst [vmem:[%s1140 + $0x10] sm:$0xff] %v974
  %1144 = vst [vmem:[%s1140 + $0x18] sm:$0xff] %v976
  %s1145 = sadd.s32 %s1129, 2
  %s1146 = smul.u32 %s1145, 4
  %s1147 = smul.addr %s1146, 8
  %s1148 = scalar_lea.vmem %s5, %s1147
  %1149 = vst [vmem:[%s1148] sm:$0xff] %v1013
  %1150 = vst [vmem:[%s1148 + $0x8] sm:$0xff] %v1015
  %1151 = vst [vmem:[%s1148 + $0x10] sm:$0xff] %v1017
  %1152 = vst [vmem:[%s1148 + $0x18] sm:$0xff] %v1019
  %s1153 = sadd.s32 %s1129, 3
  %s1154 = smul.u32 %s1153, 4
  %s1155 = smul.addr %s1154, 8
  %s1156 = scalar_lea.vmem %s5, %s1155
  %1157 = vst [vmem:[%s1156] sm:$0xff] %v1056
  %1158 = vst [vmem:[%s1156 + $0x8] sm:$0xff] %v1058
  %1159 = vst [vmem:[%s1156 + $0x10] sm:$0xff] %v1060
  %1160 = vst [vmem:[%s1156 + $0x18] sm:$0xff] %v1062
  // Predicated region
  $region26: #{conv_block_forward.1} parent=0 // pred_check
    %p1161 = pneg %p21
  $region27: #{conv_block_forward.1} parent=0 // pred_check_branch
    %1163 = sbr.rel (%p1161) target = $region29
  $region28: #{conv_block_forward.1} parent=0 // pred_region
    %v1164 = vld [vmem:[#allocation3] sm:$0xff]
    %v1165 = vld [vmem:[#allocation3 + $0x8] sm:$0xff]
    %v1166 = vmul.f32 %v1164, 0.0009765625
    %v1167 = vmul.f32 %v1165, 0.0009765625
    %v1168 = vld [vmem:[#allocation4] sm:$0xff]
    %v1169 = vld [vmem:[#allocation4 + $0x8] sm:$0xff]
    %v1170 = vmul.f32 %v1168, 0.0009765625
    %v1171 = vmul.f32 %v1169, 0.0009765625
    %v1172 = vmul.f32 %v1166, %v1166
    %v1173 = vmul.f32 %v1167, %v1167
    %v1174 = vsub.f32 %v1170, %v1172
    %v1175 = vsub.f32 %v1171, %v1173
    %v1176 = vmax.f32 %v1174, 0.0
    %v1177 = vmax.f32 %v1175, 0.0
    %v1178 = vld [vmem:[%s3] sm:$0xff]
    %v1179 = vld [vmem:[%s3 + $0x8] sm:$0xff]
    %v1180 = vadd.f32 %v1176, 1e-05
    %v1181 = vadd.f32 %v1177, 1e-05
    %v1182 = vrsqrt.pop %v1180
    %v1183 = vrsqrt.pop %v1181
    %v1184 = vmul.f32 %v1178, %v1182
    %v1185 = vmul.f32 %v1179, %v1183
    %v1186 = vld [vmem:[%s4] sm:$0xff]
    %v1187 = vld [vmem:[%s4 + $0x8] sm:$0xff]
    %v1188 = vmul.f32 %v1166, %v1184
    %v1189 = vmul.f32 %v1167, %v1185
    %v1190 = vsub.f32 %v1186, %v1188
    %v1191 = vsub.f32 %v1187, %v1189
    %v1192 = vld [vmem:[%s5] sm:$0xff]
    %v1193 = vld [vmem:[%s5 + $0x8] sm:$0xff]
    %v1194 = vld [vmem:[%s5 + $0x10] sm:$0xff]
    %v1195 = vld [vmem:[%s5 + $0x18] sm:$0xff]
    %v1196 = vld [vmem:[%s5 + $0x20] sm:$0xff]
    %v1197 = vld [vmem:[%s5 + $0x28] sm:$0xff]
    %v1198 = vld [vmem:[%s5 + $0x30] sm:$0xff]
    %v1199 = vld [vmem:[%s5 + $0x38] sm:$0xff]
    %v1200 = vld [vmem:[%s5 + $0x40] sm:$0xff]
    %v1201 = vld [vmem:[%s5 + $0x48] sm:$0xff]
    %v1202 = vld [vmem:[%s5 + $0x50] sm:$0xff]
    %v1203 = vld [vmem:[%s5 + $0x58] sm:$0xff]
    %v1204 = vld [vmem:[%s5 + $0x60] sm:$0xff]
    %v1205 = vld [vmem:[%s5 + $0x68] sm:$0xff]
    %v1206 = vld [vmem:[%s5 + $0x70] sm:$0xff]
    %v1207 = vld [vmem:[%s5 + $0x78] sm:$0xff]
    %1209 = vset.pattern.permute.xlu0 0
    %1210 = vperm.xlu0 %1209, %v1184
    %v1211 = vpop.permute.xlu0 %1210
    %1214 = vset.pattern.permute.xlu0 0
    %1215 = vperm.xlu0 %1214, %v1185
    %v1216 = vpop.permute.xlu0 %1215
    %v1218 = vmul.f32 %v1192, %v1211
    %v1219 = vmul.f32 %v1193, %v1211
    %v1220 = vmul.f32 %v1194, %v1216
    %v1221 = vmul.f32 %v1195, %v1216
    %v1222 = vmul.f32 %v1196, %v1211
    %v1223 = vmul.f32 %v1197, %v1211
    %v1224 = vmul.f32 %v1198, %v1216
    %v1225 = vmul.f32 %v1199, %v1216
    %v1226 = vmul.f32 %v1200, %v1211
    %v1227 = vmul.f32 %v1201, %v1211
    %v1228 = vmul.f32 %v1202, %v1216
    %v1229 = vmul.f32 %v1203, %v1216
    %v1230 = vmul.f32 %v1204, %v1211
    %v1231 = vmul.f32 %v1205, %v1211
    %v1232 = vmul.f32 %v1206, %v1216
    %v1233 = vmul.f32 %v1207, %v1216
    %1235 = vset.pattern.permute.xlu0 0
    %1236 = vperm.xlu0 %1235, %v1190
    %v1237 = vpop.permute.xlu0 %1236
    %1240 = vset.pattern.permute.xlu0 0
    %1241 = vperm.xlu0 %1240, %v1191
    %v1242 = vpop.permute.xlu0 %1241
    %v1244 = vadd.f32 %v1218, %v1237
    %v1245 = vadd.f32 %v1219, %v1237
    %v1246 = vadd.f32 %v1220, %v1242
    %v1247 = vadd.f32 %v1221, %v1242
    %v1248 = vadd.f32 %v1222, %v1237
    %v1249 = vadd.f32 %v1223, %v1237
    %v1250 = vadd.f32 %v1224, %v1242
    %v1251 = vadd.f32 %v1225, %v1242
    %v1252 = vadd.f32 %v1226, %v1237
    %v1253 = vadd.f32 %v1227, %v1237
    %v1254 = vadd.f32 %v1228, %v1242
    %v1255 = vadd.f32 %v1229, %v1242
    %v1256 = vadd.f32 %v1230, %v1237
    %v1257 = vadd.f32 %v1231, %v1237
    %v1258 = vadd.f32 %v1232, %v1242
    %v1259 = vadd.f32 %v1233, %v1242
    %1260 = vst [vmem:[%s5] sm:$0xff] %v1244
    %1261 = vst [vmem:[%s5 + $0x8] sm:$0xff] %v1245
    %1262 = vst [vmem:[%s5 + $0x10] sm:$0xff] %v1246
    %1263 = vst [vmem:[%s5 + $0x18] sm:$0xff] %v1247
    %1264 = vst [vmem:[%s5 + $0x20] sm:$0xff] %v1248
    %1265 = vst [vmem:[%s5 + $0x28] sm:$0xff] %v1249
    %1266 = vst [vmem:[%s5 + $0x30] sm:$0xff] %v1250
    %1267 = vst [vmem:[%s5 + $0x38] sm:$0xff] %v1251
    %1268 = vst [vmem:[%s5 + $0x40] sm:$0xff] %v1252
    %1269 = vst [vmem:[%s5 + $0x48] sm:$0xff] %v1253
    %1270 = vst [vmem:[%s5 + $0x50] sm:$0xff] %v1254
    %1271 = vst [vmem:[%s5 + $0x58] sm:$0xff] %v1255
    %1272 = vst [vmem:[%s5 + $0x60] sm:$0xff] %v1256
    %1273 = vst [vmem:[%s5 + $0x68] sm:$0xff] %v1257
    %1274 = vst [vmem:[%s5 + $0x70] sm:$0xff] %v1258
    %1275 = vst [vmem:[%s5 + $0x78] sm:$0xff] %v1259
  $region29: #{conv_block_forward.1} parent=0 // pred_fallthru
    _
  // Predicated region
  $region30: #{conv_block_forward.1} parent=0 // pred_check
    _
  $region31: #{conv_block_forward.1} parent=0 // pred_check_branch
    %1277 = sbr.rel (0) target = $region33
  $region32: #{conv_block_forward.1} parent=0 // pred_region
    _
  $region33: #{conv_block_forward.1} parent=0 // pred_fallthru
    _
  // Predicated region
  $region34: #{conv_block_forward.1} parent=0 // pred_check
    _
  $region35: #{conv_block_forward.1} parent=0 // pred_check_branch
    %1279 = sbr.rel (0) target = $region37
  $region36: #{conv_block_forward.1} parent=0 // pred_region
    _
  $region37: #{conv_block_forward.1} parent=0 // pred_fallthru
    _

</llo_original>
